<compile_context>
chip_gen: v5e
topology: v5e:2x2
jax: 0.10.0
libtpu: 0.0.40
codegen_flags: <defaults>
</compile_context>

<pallas_src>
import functools

import jax
import jax.numpy as jnp
from jax.experimental import pallas as pl
from jax.experimental.pallas import tpu as pltpu

# ---------------------------------------------------------------------------
# Config (mirrors TrajectoryPredictor.__init__ arguments)
# ---------------------------------------------------------------------------
OUTPUT_SIZE = 4            # number of predicted future frames -> head output = 2*OUTPUT_SIZE
POSITION_DIM = 8
POSE_SIZE = 16
POSE_DIM = 8
HIDDEN_DIM = 32
LSTM_LAYERS = 2
DROPOUT = 0.1              # training-time only; no-op at inference

BATCH = 2
SEQ = 8

IN_DIM = 2 + POSITION_DIM + POSE_DIM       # LSTM input feature size after embeddings (= 18)
IN_RAW = 2 + 4 + POSE_SIZE                 # raw concatenated input features (= 22)
F_PAD = ((IN_RAW + 7) // 8) * 8            # host-padded raw feature width (= 24)
LANES = 128                                # vreg lane width; 4*HIDDEN_DIM == 128 here

USE_BF16_MATMUL = False    # optional v6e/v7x speedup at reduced precision


# ---------------------------------------------------------------------------
# Fused kernel: folded embeddings + wavefront multi-layer LSTM + output head
# ---------------------------------------------------------------------------
def _fused_kernel(layout, num_layers, hidden, use_bf16, x_ref, slab_ref, out_ref):
    T, B = x_ref.shape[0], x_ref.shape[1]
    H, L = hidden, num_layers
    mmdt = jnp.bfloat16 if use_bf16 else jnp.float32

    def param(name):
        off, r = layout[name]
        return slab_ref[off:off + r, :]                  # static slice, full 128 lanes

    def mm(a, b):
        return jnp.dot(a.astype(mmdt), b, preferred_element_type=jnp.float32)

    # ---- prologue: folded embedding MLPs -> layer-0 gate input projections ----
    # Stage A (block-diag): [ball | ppos@pw1+pb1 | ppose@qw1+qb1] in one matmul,
    # lane-masked ReLU (ball passes through), then stage B folds the second
    # embedding Linears, the concat and wih0 into a single (128,128) matmul.
    x = x_ref[...].reshape(T * B, x_ref.shape[2])        # (T*B, F_PAD), time-major rows
    lane = jax.lax.broadcasted_iota(jnp.int32, (1, LANES), 1)
    u = mm(x, param('wa').astype(mmdt)) + param('ba')
    v = jnp.where(lane >= 2, jnp.maximum(u, 0.0), u)     # ReLU on embedded cols only
    gx = mm(v, param('wb').astype(mmdt)) + param('bb')   # (T*B, 4H), bias + 0.5 pre-scale folded

    # post-tanh affine constants: sigmoid(x) = 0.5*tanh(x/2) + 0.5 on i/f/o lanes
    is_g = (lane >= 2 * H) & (lane < 3 * H)
    g_scale = jnp.where(is_g, 1.0, 0.5)
    g_shift = jnp.where(is_g, 0.0, 0.5)

    whh0 = param('whh0').astype(mmdt)                    # (H, 4H), i/f/o cols pre-scaled
    wpk = [param(f'wpk{l}').astype(mmdt) for l in range(1, L)]   # (2H, 4H) = [wih_l; whh_l]
    gb = [param(f'gb{l}') for l in range(1, L)]                  # (1, 4H)

    # ---- wavefront-interleaved LSTM recurrence (fully unrolled, static indices) ----
    h = [jnp.zeros((B, H), jnp.float32) for _ in range(L)]
    c = [jnp.zeros((B, H), jnp.float32) for _ in range(L)]
    for s in range(T + L - 1):
        # 1) all active layers' gate pre-activations from the PREVIOUS wavefront state
        pre = {}
        for l in range(L):
            t = s - l
            if 0 <= t < T:
                if l == 0:
                    pre[l] = gx[t * B:(t + 1) * B, :] + mm(h[0], whh0)
                else:
                    hcat = jnp.concatenate([h[l - 1], h[l]], axis=1)      # (B, 2H)
                    pre[l] = gb[l - 1] + mm(hcat, wpk[l - 1])
        # 2) one 128-lane tanh pass per active layer + cell/hidden update
        for l, p in pre.items():
            a = jnp.tanh(p) * g_scale + g_shift          # i,f,o via sigmoid trick; g via tanh
            i_g, f_g = a[:, 0:H], a[:, H:2 * H]
            g_g, o_g = a[:, 2 * H:3 * H], a[:, 3 * H:4 * H]
            c[l] = f_g * c[l] + i_g * g_g
            h[l] = o_g * jnp.tanh(c[l])
    # TODO(synk): nn.LSTM inter-layer dropout is train-only; inference no-op here.

    # ---- output head: Linear -> ReLU -> (folded BatchNorm) -> Linear, 128-lane wide ----
    z = jnp.maximum(mm(h[L - 1], param('ow1').astype(mmdt)) + param('ob1'), 0.0)
    y = mm(z, param('ow2').astype(mmdt)) + param('ob2')
    out_ref[...] = y[:, 0:out_ref.shape[1]]


# ---------------------------------------------------------------------------
# One-time parameter preprocessing: algebraic folds + single 128-lane VMEM slab
# ---------------------------------------------------------------------------
def fold_and_pack_params(params):
    assert 4 * HIDDEN_DIM <= LANES, "gate packing assumes 4*hidden_dim <= 128 lanes"
    H, G = HIDDEN_DIM, 4 * HIDDEN_DIM
    f32 = jnp.float32
    hi = jax.lax.Precision.HIGHEST

    wih0 = params['wih0']                                 # (IN_DIM, 4H); rows: ball|pe|qe

    # ---- stage A: block-diagonal first embedding Linears (+ ball identity) ----
    w_a = jnp.zeros((F_PAD, LANES), f32)
    w_a = w_a.at[0:2, 0:2].set(jnp.eye(2, dtype=f32))
    w_a = w_a.at[2:6, 2:6].set(params['pw1'])
    w_a = w_a.at[6:22, 6:22].set(params['qw1'])
    b_a = jnp.zeros((1, LANES), f32)
    b_a = b_a.at[:, 2:6].set(params['pb1'])
    b_a = b_a.at[:, 6:22].set(params['qb1'])

    # gate-column pre-scale: sigmoid(x) = 0.5*tanh(x/2) + 0.5  ->  halve i/f/o columns
    col_scale = jnp.full((1, G), 0.5, f32).at[:, 2 * H:3 * H].set(1.0)

    # ---- stage B: second embedding Linears + concat + layer-0 W_ih folded ----
    w_b = jnp.zeros((LANES, G), f32)
    w_b = w_b.at[0:2].set(wih0[0:2])
    w_b = w_b.at[2:6].set(jnp.dot(params['pw2'], wih0[2:2 + POSITION_DIM], precision=hi))
    w_b = w_b.at[6:22].set(jnp.dot(params['qw2'],
                                   wih0[2 + POSITION_DIM:2 + POSITION_DIM + POSE_DIM],
                                   precision=hi))
    b_b = (jnp.dot(params['pb2'], wih0[2:2 + POSITION_DIM], precision=hi)
           + jnp.dot(params['qb2'], wih0[2 + POSITION_DIM:2 + POSITION_DIM + POSE_DIM],
                     precision=hi)
           + params['bih0'] + params['bhh0'])
    w_b, b_b = w_b * col_scale, b_b * col_scale

    # ---- recurrence weights (gate pre-scale folded) ----
    whh0 = params['whh0'] * col_scale                     # (H, 4H)

    # ---- output head: eval-mode BatchNorm folded into the final Linear; 128-lane pad ----
    scale = params['gamma'] * jax.lax.rsqrt(params['rvar'] + 1e-5)
    shift = params['beta'] - params['rmean'] * scale
    ow2_f = params['ow2'] * scale.reshape(H, 1)
    ob2_f = jnp.dot(shift, params['ow2'], precision=hi) + params['ob2']
    ow1_pad = jnp.zeros((H, LANES), f32).at[:, 0:H].set(params['ow1'])
    ob1_pad = jnp.zeros((1, LANES), f32).at[:, 0:H].set(params['ob1'])
    ow2_pad = jnp.zeros((LANES, LANES), f32).at[0:H, 0:2 * OUTPUT_SIZE].set(ow2_f)
    ob2_pad = jnp.zeros((1, LANES), f32).at[:, 0:2 * OUTPUT_SIZE].set(ob2_f)

    entries = [('wa', w_a), ('ba', b_a), ('wb', w_b), ('bb', b_b), ('whh0', whh0)]
    for l in range(1, LSTM_LAYERS):
        wpk = jnp.concatenate([params[f'wih{l}'], params[f'whh{l}']], axis=0) * col_scale
        gbl = (params[f'bih{l}'] + params[f'bhh{l}']) * col_scale
        entries += [(f'wpk{l}', wpk), (f'gb{l}', gbl)]
    entries += [('ow1', ow1_pad), ('ob1', ob1_pad), ('ow2', ow2_pad), ('ob2', ob2_pad)]

    layout, blocks, off = {}, [], 0
    for name, arr in entries:
        r, cc = arr.shape
        r_pad = ((r + 7) // 8) * 8                        # 8-sublane-aligned rows
        layout[name] = (off, r)
        blocks.append(jnp.pad(arr.astype(f32), ((0, r_pad - r), (0, LANES - cc))))
        off += r_pad
    slab = jnp.concatenate(blocks, axis=0)                # (rows, 128) float32, ~0.2 MiB
    return slab, layout


# ---------------------------------------------------------------------------
# Forward wrapper: host-side input packing + a single pallas_call (parallel grid)
# ---------------------------------------------------------------------------
def trajectory_predictor_forward(packed_params, ball_positions, players_positions,
                                 players_poses, *, use_bf16_matmul=USE_BF16_MATMUL):
    slab, layout = packed_params
    B, T, _ = ball_positions.shape

    # one lane-contiguous, time-major input array -> single DMA, no in-kernel concat
    x = jnp.concatenate([ball_positions, players_positions, players_poses], axis=-1)
    x = jnp.pad(x, ((0, 0), (0, 0), (0, F_PAD - x.shape[-1])))
    x = jnp.transpose(x, (1, 0, 2)).astype(jnp.float32)   # (T, B, F_PAD)

    bt = 8 if B % 8 == 0 else B                           # 8 f32 sublanes per tile if possible
    grid = (B // bt,)

    kernel = functools.partial(_fused_kernel, layout, LSTM_LAYERS, HIDDEN_DIM,
                               use_bf16_matmul)
    return pl.pallas_call(
        kernel,
        out_shape=jax.ShapeDtypeStruct((B, 2 * OUTPUT_SIZE), jnp.float32),
        grid=grid,
        in_specs=[pl.BlockSpec((T, bt, F_PAD), lambda i: (0, i, 0)),
                  pl.BlockSpec(slab.shape, lambda i: (0, 0))],
        out_specs=pl.BlockSpec((bt, 2 * OUTPUT_SIZE), lambda i: (i, 0)),
        compiler_params=pltpu.CompilerParams(
            dimension_semantics=("parallel",)),            # batch tiles -> 2nd TC on v7x
    )(x, slab)


# ---------------------------------------------------------------------------
# Deterministic parameter initialization (PyTorch-like uniform bounds)
# ---------------------------------------------------------------------------
def init_params(key):
    keys = iter(jax.random.split(key, 64))

    def lin(in_d, out_d):
        k = in_d ** -0.5
        w = jax.random.uniform(next(keys), (in_d, out_d), jnp.float32, -k, k)
        b = jax.random.uniform(next(keys), (1, out_d), jnp.float32, -k, k)
        return w, b

    p = {}
    p['pw1'], p['pb1'] = lin(4, 4)
    p['pw2'], p['pb2'] = lin(4, POSITION_DIM)
    p['qw1'], p['qb1'] = lin(POSE_SIZE, POSE_SIZE)
    p['qw2'], p['qb2'] = lin(POSE_SIZE, POSE_DIM)

    for l in range(LSTM_LAYERS):
        in_d = IN_DIM if l == 0 else HIDDEN_DIM
        k = HIDDEN_DIM ** -0.5
        p[f'wih{l}'] = jax.random.uniform(next(keys), (in_d, 4 * HIDDEN_DIM), jnp.float32, -k, k)
        p[f'whh{l}'] = jax.random.uniform(next(keys), (HIDDEN_DIM, 4 * HIDDEN_DIM), jnp.float32, -k, k)
        p[f'bih{l}'] = jax.random.uniform(next(keys), (1, 4 * HIDDEN_DIM), jnp.float32, -k, k)
        p[f'bhh{l}'] = jax.random.uniform(next(keys), (1, 4 * HIDDEN_DIM), jnp.float32, -k, k)

    p['ow1'], p['ob1'] = lin(HIDDEN_DIM, HIDDEN_DIM)
    p['gamma'] = jnp.ones((1, HIDDEN_DIM), jnp.float32)
    p['beta'] = jnp.zeros((1, HIDDEN_DIM), jnp.float32)
    p['rmean'] = jnp.zeros((1, HIDDEN_DIM), jnp.float32)
    p['rvar'] = jnp.ones((1, HIDDEN_DIM), jnp.float32)
    p['ow2'], p['ob2'] = lin(HIDDEN_DIM, 2 * OUTPUT_SIZE)
    return p


# ---------------------------------------------------------------------------
# Pure-JAX reference (unfused, same semantics) for correctness checking
# ---------------------------------------------------------------------------
def reference_forward(params, ball, ppos, ppose):
    H = HIDDEN_DIM
    pe = jnp.maximum(jnp.einsum('btd,de->bte', ppos, params['pw1']) + params['pb1'], 0.0)
    pe = jnp.einsum('btd,de->bte', pe, params['pw2']) + params['pb2']
    qe = jnp.maximum(jnp.einsum('btd,de->bte', ppose, params['qw1']) + params['qb1'], 0.0)
    qe = jnp.einsum('btd,de->bte', qe, params['qw2']) + params['qb2']
    seq = jnp.concatenate([ball, pe, qe], axis=-1)
    B, T, _ = seq.shape
    for l in range(LSTM_LAYERS):
        wih, whh = params[f'wih{l}'], params[f'whh{l}']
        bias = params[f'bih{l}'] + params[f'bhh{l}']
        h = jnp.zeros((B, H), jnp.float32)
        c = jnp.zeros((B, H), jnp.float32)
        outs = []
        for t in range(T):
            g = seq[:, t, :] @ wih + h @ whh + bias
            i = jax.nn.sigmoid(g[:, :H])
            f = jax.nn.sigmoid(g[:, H:2 * H])
            gg = jnp.tanh(g[:, 2 * H:3 * H])
            o = jax.nn.sigmoid(g[:, 3 * H:])
            c = f * c + i * gg
            h = o * jnp.tanh(c)
            outs.append(h)
        seq = jnp.stack(outs, axis=1)
    h_last = seq[:, -1, :]
    z = jnp.maximum(h_last @ params['ow1'] + params['ob1'], 0.0)
    z = (z - params['rmean']) / jnp.sqrt(params['rvar'] + 1e-5) * params['gamma'] + params['beta']
    return z @ params['ow2'] + params['ob2']


if __name__ == "__main__":
    key = jax.random.PRNGKey(0)
    kp, kb, k1, k2 = jax.random.split(key, 4)
    params = init_params(kp)
    packed = fold_and_pack_params(params)     # one-time weight preprocessing

    ball_positions = jax.random.normal(kb, (BATCH, SEQ, 2), jnp.float32)
    players_positions = jax.random.normal(k1, (BATCH, SEQ, 4), jnp.float32)
    players_poses = jax.random.normal(k2, (BATCH, SEQ, POSE_SIZE), jnp.float32)

    out = trajectory_predictor_forward(packed, ball_positions, players_positions, players_poses)
    out = jax.block_until_ready(out)

    ref = reference_forward(params, ball_positions, players_positions, players_poses)
    assert out.shape == (BATCH, 2 * OUTPUT_SIZE), out.shape
    # Tolerance documents default MXU matmul precision + the sigmoid-via-tanh
    # identity; pack-time folds are done at HIGHEST precision.  Real bugs show
    # up as O(0.1) errors, far above this bound.
    if not jnp.allclose(out, ref, rtol=1e-3, atol=1e-3):
        raise AssertionError("Pallas kernel output mismatch vs pure-JAX reference")

    print("KERNEL_OK")
</pallas_src>

<mosaic_0001>
module attributes {stable_mosaic.version = 11 : i64} {
  func.func @_fused_kernel(%arg0: i32, %arg1: memref<8x2x24xf32, #tpu.memory_space<vmem>>, %arg2: memref<448x128xf32, #tpu.memory_space<vmem>>, %arg3: memref<2x8xf32, #tpu.memory_space<vmem>>) attributes {dimension_semantics = [#tpu.dimension_semantics<parallel>], iteration_bounds = array<i64: 1>, scalar_prefetch = 0 : i64, scratch_operands = 0 : i64, tpu.core_type = #tpu.core_type<tc>, window_params = [{transform_indices = @transform_0, window_bounds = array<i64: 8, 2, 24>}, {pipeline_mode = #tpu.pipeline_mode<synchronous>, transform_indices = @transform_1, window_bounds = array<i64: 448, 128>}, {transform_indices = @transform_2, window_bounds = array<i64: 2, 8>}]} {
    %c0 = arith.constant 0 : index
    %c0_0 = arith.constant 0 : index
    %c0_1 = arith.constant 0 : index
    %0 = vector.load %arg1[%c0, %c0_0, %c0_1] : memref<8x2x24xf32, #tpu.memory_space<vmem>>, vector<8x2x24xf32>
    %1 = vector.shape_cast %0 : vector<8x2x24xf32> to vector<16x24xf32>
    %2 = tpu.iota {dimensions = array<i32: 1>} : vector<1x128xi32>
    %c0_2 = arith.constant 0 : index
    %c0_3 = arith.constant 0 : index
    %3 = vector.load %arg2[%c0_2, %c0_3] : memref<448x128xf32, #tpu.memory_space<vmem>>, vector<24x128xf32>
    %cst = arith.constant dense<0.000000e+00> : vector<16x128xf32>
    %4 = tpu.matmul %1, %3, %cst {dimension_numbers = #tpu.dot_dimension_numbers<[1], [0], [0], [1], [0, 0, 1, 1], [], []>} : vector<16x24xf32>, vector<24x128xf32>, vector<16x128xf32> -> vector<16x128xf32>
    %c24 = arith.constant 24 : index
    %c0_4 = arith.constant 0 : index
    %5 = vector.load %arg2[%c24, %c0_4] : memref<448x128xf32, #tpu.memory_space<vmem>>, vector<1x128xf32>
    %6 = vector.broadcast %5 : vector<1x128xf32> to vector<16x128xf32>
    %7 = arith.addf %4, %6 : vector<16x128xf32>
    %c2_i32 = arith.constant 2 : i32
    %8 = vector.broadcast %c2_i32 : i32 to vector<1x128xi32>
    %9 = arith.cmpi sge, %2, %8 : vector<1x128xi32>
    %cst_5 = arith.constant 0.000000e+00 : f32
    %10 = vector.broadcast %cst_5 : f32 to vector<16x128xf32>
    %11 = arith.maximumf %7, %10 : vector<16x128xf32>
    %12 = vector.shape_cast %9 : vector<1x128xi1> to vector<1x128xi1>
    %13 = vector.broadcast %12 : vector<1x128xi1> to vector<16x128xi1>
    %14 = arith.select %13, %11, %7 : vector<16x128xi1>, vector<16x128xf32>
    %c32 = arith.constant 32 : index
    %c0_6 = arith.constant 0 : index
    %15 = vector.load %arg2[%c32, %c0_6] : memref<448x128xf32, #tpu.memory_space<vmem>>, vector<128x128xf32>
    %cst_7 = arith.constant dense<0.000000e+00> : vector<16x128xf32>
    %16 = tpu.matmul %14, %15, %cst_7 {dimension_numbers = #tpu.dot_dimension_numbers<[1], [0], [0], [1], [0, 0, 1, 1], [], []>} : vector<16x128xf32>, vector<128x128xf32>, vector<16x128xf32> -> vector<16x128xf32>
    %c160 = arith.constant 160 : index
    %c0_8 = arith.constant 0 : index
    %17 = vector.load %arg2[%c160, %c0_8] : memref<448x128xf32, #tpu.memory_space<vmem>>, vector<1x128xf32>
    %18 = vector.broadcast %17 : vector<1x128xf32> to vector<16x128xf32>
    %19 = arith.addf %16, %18 : vector<16x128xf32>
    %c64_i32 = arith.constant 64 : i32
    %20 = vector.broadcast %c64_i32 : i32 to vector<1x128xi32>
    %21 = arith.cmpi sge, %2, %20 : vector<1x128xi32>
    %c96_i32 = arith.constant 96 : i32
    %22 = vector.broadcast %c96_i32 : i32 to vector<1x128xi32>
    %23 = arith.cmpi slt, %2, %22 : vector<1x128xi32>
    %24 = arith.andi %21, %23 : vector<1x128xi1>
    %cst_9 = arith.constant 1.000000e+00 : f32
    %cst_10 = arith.constant 5.000000e-01 : f32
    %25 = vector.broadcast %cst_9 : f32 to vector<1x128xf32>
    %26 = vector.broadcast %cst_10 : f32 to vector<1x128xf32>
    %27 = arith.select %24, %25, %26 : vector<1x128xi1>, vector<1x128xf32>
    %cst_11 = arith.constant 0.000000e+00 : f32
    %cst_12 = arith.constant 5.000000e-01 : f32
    %28 = vector.broadcast %cst_11 : f32 to vector<1x128xf32>
    %29 = vector.broadcast %cst_12 : f32 to vector<1x128xf32>
    %30 = arith.select %24, %28, %29 : vector<1x128xi1>, vector<1x128xf32>
    %c168 = arith.constant 168 : index
    %c0_13 = arith.constant 0 : index
    %31 = vector.load %arg2[%c168, %c0_13] : memref<448x128xf32, #tpu.memory_space<vmem>>, vector<32x128xf32>
    %c200 = arith.constant 200 : index
    %c0_14 = arith.constant 0 : index
    %32 = vector.load %arg2[%c200, %c0_14] : memref<448x128xf32, #tpu.memory_space<vmem>>, vector<64x128xf32>
    %c264 = arith.constant 264 : index
    %c0_15 = arith.constant 0 : index
    %33 = vector.load %arg2[%c264, %c0_15] : memref<448x128xf32, #tpu.memory_space<vmem>>, vector<1x128xf32>
    %cst_16 = arith.constant 0.000000e+00 : f32
    %34 = vector.broadcast %cst_16 : f32 to vector<2x32xf32>
    %cst_17 = arith.constant 0.000000e+00 : f32
    %35 = vector.broadcast %cst_17 : f32 to vector<2x32xf32>
    %cst_18 = arith.constant 0.000000e+00 : f32
    %36 = vector.broadcast %cst_18 : f32 to vector<2x32xf32>
    %cst_19 = arith.constant 0.000000e+00 : f32
    %37 = vector.broadcast %cst_19 : f32 to vector<2x32xf32>
    %38 = vector.extract_strided_slice %19 {offsets = [0, 0], sizes = [2, 128], strides = [1, 1]} : vector<16x128xf32> to vector<2x128xf32>
    %cst_20 = arith.constant dense<0.000000e+00> : vector<2x128xf32>
    %39 = tpu.matmul %34, %31, %cst_20 {dimension_numbers = #tpu.dot_dimension_numbers<[1], [0], [0], [1], [0, 0, 1, 1], [], []>} : vector<2x32xf32>, vector<32x128xf32>, vector<2x128xf32> -> vector<2x128xf32>
    %40 = arith.addf %38, %39 : vector<2x128xf32>
    %41 = math.tanh %40 : vector<2x128xf32>
    %42 = vector.broadcast %27 : vector<1x128xf32> to vector<2x128xf32>
    %43 = arith.mulf %41, %42 : vector<2x128xf32>
    %44 = vector.broadcast %30 : vector<1x128xf32> to vector<2x128xf32>
    %45 = arith.addf %43, %44 : vector<2x128xf32>
    %46 = vector.extract_strided_slice %45 {offsets = [0, 0], sizes = [2, 32], strides = [1, 1]} : vector<2x128xf32> to vector<2x32xf32>
    %47 = vector.extract_strided_slice %45 {offsets = [0, 32], sizes = [2, 32], strides = [1, 1]} : vector<2x128xf32> to vector<2x32xf32>
    %48 = vector.extract_strided_slice %45 {offsets = [0, 64], sizes = [2, 32], strides = [1, 1]} : vector<2x128xf32> to vector<2x32xf32>
    %49 = vector.extract_strided_slice %45 {offsets = [0, 96], sizes = [2, 32], strides = [1, 1]} : vector<2x128xf32> to vector<2x32xf32>
    %50 = arith.mulf %47, %36 : vector<2x32xf32>
    %51 = arith.mulf %46, %48 : vector<2x32xf32>
    %52 = arith.addf %50, %51 : vector<2x32xf32>
    %53 = math.tanh %52 : vector<2x32xf32>
    %54 = arith.mulf %49, %53 : vector<2x32xf32>
    %55 = vector.extract_strided_slice %19 {offsets = [2, 0], sizes = [2, 128], strides = [1, 1]} : vector<16x128xf32> to vector<2x128xf32>
    %cst_21 = arith.constant dense<0.000000e+00> : vector<2x128xf32>
    %56 = tpu.matmul %54, %31, %cst_21 {dimension_numbers = #tpu.dot_dimension_numbers<[1], [0], [0], [1], [0, 0, 1, 1], [], []>} : vector<2x32xf32>, vector<32x128xf32>, vector<2x128xf32> -> vector<2x128xf32>
    %57 = arith.addf %55, %56 : vector<2x128xf32>
    %58 = tpu.concatenate %54, %35 in 1 : vector<2x32xf32>, vector<2x32xf32> -> vector<2x64xf32>
    %cst_22 = arith.constant dense<0.000000e+00> : vector<2x128xf32>
    %59 = tpu.matmul %58, %32, %cst_22 {dimension_numbers = #tpu.dot_dimension_numbers<[1], [0], [0], [1], [0, 0, 1, 1], [], []>} : vector<2x64xf32>, vector<64x128xf32>, vector<2x128xf32> -> vector<2x128xf32>
    %60 = vector.broadcast %33 : vector<1x128xf32> to vector<2x128xf32>
    %61 = arith.addf %60, %59 : vector<2x128xf32>
    %62 = math.tanh %57 : vector<2x128xf32>
    %63 = vector.broadcast %27 : vector<1x128xf32> to vector<2x128xf32>
    %64 = arith.mulf %62, %63 : vector<2x128xf32>
    %65 = vector.broadcast %30 : vector<1x128xf32> to vector<2x128xf32>
    %66 = arith.addf %64, %65 : vector<2x128xf32>
    %67 = vector.extract_strided_slice %66 {offsets = [0, 0], sizes = [2, 32], strides = [1, 1]} : vector<2x128xf32> to vector<2x32xf32>
    %68 = vector.extract_strided_slice %66 {offsets = [0, 32], sizes = [2, 32], strides = [1, 1]} : vector<2x128xf32> to vector<2x32xf32>
    %69 = vector.extract_strided_slice %66 {offsets = [0, 64], sizes = [2, 32], strides = [1, 1]} : vector<2x128xf32> to vector<2x32xf32>
    %70 = vector.extract_strided_slice %66 {offsets = [0, 96], sizes = [2, 32], strides = [1, 1]} : vector<2x128xf32> to vector<2x32xf32>
    %71 = arith.mulf %68, %52 : vector<2x32xf32>
    %72 = arith.mulf %67, %69 : vector<2x32xf32>
    %73 = arith.addf %71, %72 : vector<2x32xf32>
    %74 = math.tanh %73 : vector<2x32xf32>
    %75 = arith.mulf %70, %74 : vector<2x32xf32>
    %76 = math.tanh %61 : vector<2x128xf32>
    %77 = vector.broadcast %27 : vector<1x128xf32> to vector<2x128xf32>
    %78 = arith.mulf %76, %77 : vector<2x128xf32>
    %79 = vector.broadcast %30 : vector<1x128xf32> to vector<2x128xf32>
    %80 = arith.addf %78, %79 : vector<2x128xf32>
    %81 = vector.extract_strided_slice %80 {offsets = [0, 0], sizes = [2, 32], strides = [1, 1]} : vector<2x128xf32> to vector<2x32xf32>
    %82 = vector.extract_strided_slice %80 {offsets = [0, 32], sizes = [2, 32], strides = [1, 1]} : vector<2x128xf32> to vector<2x32xf32>
    %83 = vector.extract_strided_slice %80 {offsets = [0, 64], sizes = [2, 32], strides = [1, 1]} : vector<2x128xf32> to vector<2x32xf32>
    %84 = vector.extract_strided_slice %80 {offsets = [0, 96], sizes = [2, 32], strides = [1, 1]} : vector<2x128xf32> to vector<2x32xf32>
    %85 = arith.mulf %82, %37 : vector<2x32xf32>
    %86 = arith.mulf %81, %83 : vector<2x32xf32>
    %87 = arith.addf %85, %86 : vector<2x32xf32>
    %88 = math.tanh %87 : vector<2x32xf32>
    %89 = arith.mulf %84, %88 : vector<2x32xf32>
    %90 = vector.extract_strided_slice %19 {offsets = [4, 0], sizes = [2, 128], strides = [1, 1]} : vector<16x128xf32> to vector<2x128xf32>
    %cst_23 = arith.constant dense<0.000000e+00> : vector<2x128xf32>
    %91 = tpu.matmul %75, %31, %cst_23 {dimension_numbers = #tpu.dot_dimension_numbers<[1], [0], [0], [1], [0, 0, 1, 1], [], []>} : vector<2x32xf32>, vector<32x128xf32>, vector<2x128xf32> -> vector<2x128xf32>
    %92 = arith.addf %90, %91 : vector<2x128xf32>
    %93 = tpu.concatenate %75, %89 in 1 : vector<2x32xf32>, vector<2x32xf32> -> vector<2x64xf32>
    %cst_24 = arith.constant dense<0.000000e+00> : vector<2x128xf32>
    %94 = tpu.matmul %93, %32, %cst_24 {dimension_numbers = #tpu.dot_dimension_numbers<[1], [0], [0], [1], [0, 0, 1, 1], [], []>} : vector<2x64xf32>, vector<64x128xf32>, vector<2x128xf32> -> vector<2x128xf32>
    %95 = vector.broadcast %33 : vector<1x128xf32> to vector<2x128xf32>
    %96 = arith.addf %95, %94 : vector<2x128xf32>
    %97 = math.tanh %92 : vector<2x128xf32>
    %98 = vector.broadcast %27 : vector<1x128xf32> to vector<2x128xf32>
    %99 = arith.mulf %97, %98 : vector<2x128xf32>
    %100 = vector.broadcast %30 : vector<1x128xf32> to vector<2x128xf32>
    %101 = arith.addf %99, %100 : vector<2x128xf32>
    %102 = vector.extract_strided_slice %101 {offsets = [0, 0], sizes = [2, 32], strides = [1, 1]} : vector<2x128xf32> to vector<2x32xf32>
    %103 = vector.extract_strided_slice %101 {offsets = [0, 32], sizes = [2, 32], strides = [1, 1]} : vector<2x128xf32> to vector<2x32xf32>
    %104 = vector.extract_strided_slice %101 {offsets = [0, 64], sizes = [2, 32], strides = [1, 1]} : vector<2x128xf32> to vector<2x32xf32>
    %105 = vector.extract_strided_slice %101 {offsets = [0, 96], sizes = [2, 32], strides = [1, 1]} : vector<2x128xf32> to vector<2x32xf32>
    %106 = arith.mulf %103, %73 : vector<2x32xf32>
    %107 = arith.mulf %102, %104 : vector<2x32xf32>
    %108 = arith.addf %106, %107 : vector<2x32xf32>
    %109 = math.tanh %108 : vector<2x32xf32>
    %110 = arith.mulf %105, %109 : vector<2x32xf32>
    %111 = math.tanh %96 : vector<2x128xf32>
    %112 = vector.broadcast %27 : vector<1x128xf32> to vector<2x128xf32>
    %113 = arith.mulf %111, %112 : vector<2x128xf32>
    %114 = vector.broadcast %30 : vector<1x128xf32> to vector<2x128xf32>
    %115 = arith.addf %113, %114 : vector<2x128xf32>
    %116 = vector.extract_strided_slice %115 {offsets = [0, 0], sizes = [2, 32], strides = [1, 1]} : vector<2x128xf32> to vector<2x32xf32>
    %117 = vector.extract_strided_slice %115 {offsets = [0, 32], sizes = [2, 32], strides = [1, 1]} : vector<2x128xf32> to vector<2x32xf32>
    %118 = vector.extract_strided_slice %115 {offsets = [0, 64], sizes = [2, 32], strides = [1, 1]} : vector<2x128xf32> to vector<2x32xf32>
    %119 = vector.extract_strided_slice %115 {offsets = [0, 96], sizes = [2, 32], strides = [1, 1]} : vector<2x128xf32> to vector<2x32xf32>
    %120 = arith.mulf %117, %87 : vector<2x32xf32>
    %121 = arith.mulf %116, %118 : vector<2x32xf32>
    %122 = arith.addf %120, %121 : vector<2x32xf32>
    %123 = math.tanh %122 : vector<2x32xf32>
    %124 = arith.mulf %119, %123 : vector<2x32xf32>
    %125 = vector.extract_strided_slice %19 {offsets = [6, 0], sizes = [2, 128], strides = [1, 1]} : vector<16x128xf32> to vector<2x128xf32>
    %cst_25 = arith.constant dense<0.000000e+00> : vector<2x128xf32>
    %126 = tpu.matmul %110, %31, %cst_25 {dimension_numbers = #tpu.dot_dimension_numbers<[1], [0], [0], [1], [0, 0, 1, 1], [], []>} : vector<2x32xf32>, vector<32x128xf32>, vector<2x128xf32> -> vector<2x128xf32>
    %127 = arith.addf %125, %126 : vector<2x128xf32>
    %128 = tpu.concatenate %110, %124 in 1 : vector<2x32xf32>, vector<2x32xf32> -> vector<2x64xf32>
    %cst_26 = arith.constant dense<0.000000e+00> : vector<2x128xf32>
    %129 = tpu.matmul %128, %32, %cst_26 {dimension_numbers = #tpu.dot_dimension_numbers<[1], [0], [0], [1], [0, 0, 1, 1], [], []>} : vector<2x64xf32>, vector<64x128xf32>, vector<2x128xf32> -> vector<2x128xf32>
    %130 = vector.broadcast %33 : vector<1x128xf32> to vector<2x128xf32>
    %131 = arith.addf %130, %129 : vector<2x128xf32>
    %132 = math.tanh %127 : vector<2x128xf32>
    %133 = vector.broadcast %27 : vector<1x128xf32> to vector<2x128xf32>
    %134 = arith.mulf %132, %133 : vector<2x128xf32>
    %135 = vector.broadcast %30 : vector<1x128xf32> to vector<2x128xf32>
    %136 = arith.addf %134, %135 : vector<2x128xf32>
    %137 = vector.extract_strided_slice %136 {offsets = [0, 0], sizes = [2, 32], strides = [1, 1]} : vector<2x128xf32> to vector<2x32xf32>
    %138 = vector.extract_strided_slice %136 {offsets = [0, 32], sizes = [2, 32], strides = [1, 1]} : vector<2x128xf32> to vector<2x32xf32>
    %139 = vector.extract_strided_slice %136 {offsets = [0, 64], sizes = [2, 32], strides = [1, 1]} : vector<2x128xf32> to vector<2x32xf32>
    %140 = vector.extract_strided_slice %136 {offsets = [0, 96], sizes = [2, 32], strides = [1, 1]} : vector<2x128xf32> to vector<2x32xf32>
    %141 = arith.mulf %138, %108 : vector<2x32xf32>
    %142 = arith.mulf %137, %139 : vector<2x32xf32>
    %143 = arith.addf %141, %142 : vector<2x32xf32>
    %144 = math.tanh %143 : vector<2x32xf32>
    %145 = arith.mulf %140, %144 : vector<2x32xf32>
    %146 = math.tanh %131 : vector<2x128xf32>
    %147 = vector.broadcast %27 : vector<1x128xf32> to vector<2x128xf32>
    %148 = arith.mulf %146, %147 : vector<2x128xf32>
    %149 = vector.broadcast %30 : vector<1x128xf32> to vector<2x128xf32>
    %150 = arith.addf %148, %149 : vector<2x128xf32>
    %151 = vector.extract_strided_slice %150 {offsets = [0, 0], sizes = [2, 32], strides = [1, 1]} : vector<2x128xf32> to vector<2x32xf32>
    %152 = vector.extract_strided_slice %150 {offsets = [0, 32], sizes = [2, 32], strides = [1, 1]} : vector<2x128xf32> to vector<2x32xf32>
    %153 = vector.extract_strided_slice %150 {offsets = [0, 64], sizes = [2, 32], strides = [1, 1]} : vector<2x128xf32> to vector<2x32xf32>
    %154 = vector.extract_strided_slice %150 {offsets = [0, 96], sizes = [2, 32], strides = [1, 1]} : vector<2x128xf32> to vector<2x32xf32>
    %155 = arith.mulf %152, %122 : vector<2x32xf32>
    %156 = arith.mulf %151, %153 : vector<2x32xf32>
    %157 = arith.addf %155, %156 : vector<2x32xf32>
    %158 = math.tanh %157 : vector<2x32xf32>
    %159 = arith.mulf %154, %158 : vector<2x32xf32>
    %160 = vector.extract_strided_slice %19 {offsets = [8, 0], sizes = [2, 128], strides = [1, 1]} : vector<16x128xf32> to vector<2x128xf32>
    %cst_27 = arith.constant dense<0.000000e+00> : vector<2x128xf32>
    %161 = tpu.matmul %145, %31, %cst_27 {dimension_numbers = #tpu.dot_dimension_numbers<[1], [0], [0], [1], [0, 0, 1, 1], [], []>} : vector<2x32xf32>, vector<32x128xf32>, vector<2x128xf32> -> vector<2x128xf32>
    %162 = arith.addf %160, %161 : vector<2x128xf32>
    %163 = tpu.concatenate %145, %159 in 1 : vector<2x32xf32>, vector<2x32xf32> -> vector<2x64xf32>
    %cst_28 = arith.constant dense<0.000000e+00> : vector<2x128xf32>
    %164 = tpu.matmul %163, %32, %cst_28 {dimension_numbers = #tpu.dot_dimension_numbers<[1], [0], [0], [1], [0, 0, 1, 1], [], []>} : vector<2x64xf32>, vector<64x128xf32>, vector<2x128xf32> -> vector<2x128xf32>
    %165 = vector.broadcast %33 : vector<1x128xf32> to vector<2x128xf32>
    %166 = arith.addf %165, %164 : vector<2x128xf32>
    %167 = math.tanh %162 : vector<2x128xf32>
    %168 = vector.broadcast %27 : vector<1x128xf32> to vector<2x128xf32>
    %169 = arith.mulf %167, %168 : vector<2x128xf32>
    %170 = vector.broadcast %30 : vector<1x128xf32> to vector<2x128xf32>
    %171 = arith.addf %169, %170 : vector<2x128xf32>
    %172 = vector.extract_strided_slice %171 {offsets = [0, 0], sizes = [2, 32], strides = [1, 1]} : vector<2x128xf32> to vector<2x32xf32>
    %173 = vector.extract_strided_slice %171 {offsets = [0, 32], sizes = [2, 32], strides = [1, 1]} : vector<2x128xf32> to vector<2x32xf32>
    %174 = vector.extract_strided_slice %171 {offsets = [0, 64], sizes = [2, 32], strides = [1, 1]} : vector<2x128xf32> to vector<2x32xf32>
    %175 = vector.extract_strided_slice %171 {offsets = [0, 96], sizes = [2, 32], strides = [1, 1]} : vector<2x128xf32> to vector<2x32xf32>
    %176 = arith.mulf %173, %143 : vector<2x32xf32>
    %177 = arith.mulf %172, %174 : vector<2x32xf32>
    %178 = arith.addf %176, %177 : vector<2x32xf32>
    %179 = math.tanh %178 : vector<2x32xf32>
    %180 = arith.mulf %175, %179 : vector<2x32xf32>
    %181 = math.tanh %166 : vector<2x128xf32>
    %182 = vector.broadcast %27 : vector<1x128xf32> to vector<2x128xf32>
    %183 = arith.mulf %181, %182 : vector<2x128xf32>
    %184 = vector.broadcast %30 : vector<1x128xf32> to vector<2x128xf32>
    %185 = arith.addf %183, %184 : vector<2x128xf32>
    %186 = vector.extract_strided_slice %185 {offsets = [0, 0], sizes = [2, 32], strides = [1, 1]} : vector<2x128xf32> to vector<2x32xf32>
    %187 = vector.extract_strided_slice %185 {offsets = [0, 32], sizes = [2, 32], strides = [1, 1]} : vector<2x128xf32> to vector<2x32xf32>
    %188 = vector.extract_strided_slice %185 {offsets = [0, 64], sizes = [2, 32], strides = [1, 1]} : vector<2x128xf32> to vector<2x32xf32>
    %189 = vector.extract_strided_slice %185 {offsets = [0, 96], sizes = [2, 32], strides = [1, 1]} : vector<2x128xf32> to vector<2x32xf32>
    %190 = arith.mulf %187, %157 : vector<2x32xf32>
    %191 = arith.mulf %186, %188 : vector<2x32xf32>
    %192 = arith.addf %190, %191 : vector<2x32xf32>
    %193 = math.tanh %192 : vector<2x32xf32>
    %194 = arith.mulf %189, %193 : vector<2x32xf32>
    %195 = vector.extract_strided_slice %19 {offsets = [10, 0], sizes = [2, 128], strides = [1, 1]} : vector<16x128xf32> to vector<2x128xf32>
    %cst_29 = arith.constant dense<0.000000e+00> : vector<2x128xf32>
    %196 = tpu.matmul %180, %31, %cst_29 {dimension_numbers = #tpu.dot_dimension_numbers<[1], [0], [0], [1], [0, 0, 1, 1], [], []>} : vector<2x32xf32>, vector<32x128xf32>, vector<2x128xf32> -> vector<2x128xf32>
    %197 = arith.addf %195, %196 : vector<2x128xf32>
    %198 = tpu.concatenate %180, %194 in 1 : vector<2x32xf32>, vector<2x32xf32> -> vector<2x64xf32>
    %cst_30 = arith.constant dense<0.000000e+00> : vector<2x128xf32>
    %199 = tpu.matmul %198, %32, %cst_30 {dimension_numbers = #tpu.dot_dimension_numbers<[1], [0], [0], [1], [0, 0, 1, 1], [], []>} : vector<2x64xf32>, vector<64x128xf32>, vector<2x128xf32> -> vector<2x128xf32>
    %200 = vector.broadcast %33 : vector<1x128xf32> to vector<2x128xf32>
    %201 = arith.addf %200, %199 : vector<2x128xf32>
    %202 = math.tanh %197 : vector<2x128xf32>
    %203 = vector.broadcast %27 : vector<1x128xf32> to vector<2x128xf32>
    %204 = arith.mulf %202, %203 : vector<2x128xf32>
    %205 = vector.broadcast %30 : vector<1x128xf32> to vector<2x128xf32>
    %206 = arith.addf %204, %205 : vector<2x128xf32>
    %207 = vector.extract_strided_slice %206 {offsets = [0, 0], sizes = [2, 32], strides = [1, 1]} : vector<2x128xf32> to vector<2x32xf32>
    %208 = vector.extract_strided_slice %206 {offsets = [0, 32], sizes = [2, 32], strides = [1, 1]} : vector<2x128xf32> to vector<2x32xf32>
    %209 = vector.extract_strided_slice %206 {offsets = [0, 64], sizes = [2, 32], strides = [1, 1]} : vector<2x128xf32> to vector<2x32xf32>
    %210 = vector.extract_strided_slice %206 {offsets = [0, 96], sizes = [2, 32], strides = [1, 1]} : vector<2x128xf32> to vector<2x32xf32>
    %211 = arith.mulf %208, %178 : vector<2x32xf32>
    %212 = arith.mulf %207, %209 : vector<2x32xf32>
    %213 = arith.addf %211, %212 : vector<2x32xf32>
    %214 = math.tanh %213 : vector<2x32xf32>
    %215 = arith.mulf %210, %214 : vector<2x32xf32>
    %216 = math.tanh %201 : vector<2x128xf32>
    %217 = vector.broadcast %27 : vector<1x128xf32> to vector<2x128xf32>
    %218 = arith.mulf %216, %217 : vector<2x128xf32>
    %219 = vector.broadcast %30 : vector<1x128xf32> to vector<2x128xf32>
    %220 = arith.addf %218, %219 : vector<2x128xf32>
    %221 = vector.extract_strided_slice %220 {offsets = [0, 0], sizes = [2, 32], strides = [1, 1]} : vector<2x128xf32> to vector<2x32xf32>
    %222 = vector.extract_strided_slice %220 {offsets = [0, 32], sizes = [2, 32], strides = [1, 1]} : vector<2x128xf32> to vector<2x32xf32>
    %223 = vector.extract_strided_slice %220 {offsets = [0, 64], sizes = [2, 32], strides = [1, 1]} : vector<2x128xf32> to vector<2x32xf32>
    %224 = vector.extract_strided_slice %220 {offsets = [0, 96], sizes = [2, 32], strides = [1, 1]} : vector<2x128xf32> to vector<2x32xf32>
    %225 = arith.mulf %222, %192 : vector<2x32xf32>
    %226 = arith.mulf %221, %223 : vector<2x32xf32>
    %227 = arith.addf %225, %226 : vector<2x32xf32>
    %228 = math.tanh %227 : vector<2x32xf32>
    %229 = arith.mulf %224, %228 : vector<2x32xf32>
    %230 = vector.extract_strided_slice %19 {offsets = [12, 0], sizes = [2, 128], strides = [1, 1]} : vector<16x128xf32> to vector<2x128xf32>
    %cst_31 = arith.constant dense<0.000000e+00> : vector<2x128xf32>
    %231 = tpu.matmul %215, %31, %cst_31 {dimension_numbers = #tpu.dot_dimension_numbers<[1], [0], [0], [1], [0, 0, 1, 1], [], []>} : vector<2x32xf32>, vector<32x128xf32>, vector<2x128xf32> -> vector<2x128xf32>
    %232 = arith.addf %230, %231 : vector<2x128xf32>
    %233 = tpu.concatenate %215, %229 in 1 : vector<2x32xf32>, vector<2x32xf32> -> vector<2x64xf32>
    %cst_32 = arith.constant dense<0.000000e+00> : vector<2x128xf32>
    %234 = tpu.matmul %233, %32, %cst_32 {dimension_numbers = #tpu.dot_dimension_numbers<[1], [0], [0], [1], [0, 0, 1, 1], [], []>} : vector<2x64xf32>, vector<64x128xf32>, vector<2x128xf32> -> vector<2x128xf32>
    %235 = vector.broadcast %33 : vector<1x128xf32> to vector<2x128xf32>
    %236 = arith.addf %235, %234 : vector<2x128xf32>
    %237 = math.tanh %232 : vector<2x128xf32>
    %238 = vector.broadcast %27 : vector<1x128xf32> to vector<2x128xf32>
    %239 = arith.mulf %237, %238 : vector<2x128xf32>
    %240 = vector.broadcast %30 : vector<1x128xf32> to vector<2x128xf32>
    %241 = arith.addf %239, %240 : vector<2x128xf32>
    %242 = vector.extract_strided_slice %241 {offsets = [0, 0], sizes = [2, 32], strides = [1, 1]} : vector<2x128xf32> to vector<2x32xf32>
    %243 = vector.extract_strided_slice %241 {offsets = [0, 32], sizes = [2, 32], strides = [1, 1]} : vector<2x128xf32> to vector<2x32xf32>
    %244 = vector.extract_strided_slice %241 {offsets = [0, 64], sizes = [2, 32], strides = [1, 1]} : vector<2x128xf32> to vector<2x32xf32>
    %245 = vector.extract_strided_slice %241 {offsets = [0, 96], sizes = [2, 32], strides = [1, 1]} : vector<2x128xf32> to vector<2x32xf32>
    %246 = arith.mulf %243, %213 : vector<2x32xf32>
    %247 = arith.mulf %242, %244 : vector<2x32xf32>
    %248 = arith.addf %246, %247 : vector<2x32xf32>
    %249 = math.tanh %248 : vector<2x32xf32>
    %250 = arith.mulf %245, %249 : vector<2x32xf32>
    %251 = math.tanh %236 : vector<2x128xf32>
    %252 = vector.broadcast %27 : vector<1x128xf32> to vector<2x128xf32>
    %253 = arith.mulf %251, %252 : vector<2x128xf32>
    %254 = vector.broadcast %30 : vector<1x128xf32> to vector<2x128xf32>
    %255 = arith.addf %253, %254 : vector<2x128xf32>
    %256 = vector.extract_strided_slice %255 {offsets = [0, 0], sizes = [2, 32], strides = [1, 1]} : vector<2x128xf32> to vector<2x32xf32>
    %257 = vector.extract_strided_slice %255 {offsets = [0, 32], sizes = [2, 32], strides = [1, 1]} : vector<2x128xf32> to vector<2x32xf32>
    %258 = vector.extract_strided_slice %255 {offsets = [0, 64], sizes = [2, 32], strides = [1, 1]} : vector<2x128xf32> to vector<2x32xf32>
    %259 = vector.extract_strided_slice %255 {offsets = [0, 96], sizes = [2, 32], strides = [1, 1]} : vector<2x128xf32> to vector<2x32xf32>
    %260 = arith.mulf %257, %227 : vector<2x32xf32>
    %261 = arith.mulf %256, %258 : vector<2x32xf32>
    %262 = arith.addf %260, %261 : vector<2x32xf32>
    %263 = math.tanh %262 : vector<2x32xf32>
    %264 = arith.mulf %259, %263 : vector<2x32xf32>
    %265 = vector.extract_strided_slice %19 {offsets = [14, 0], sizes = [2, 128], strides = [1, 1]} : vector<16x128xf32> to vector<2x128xf32>
    %cst_33 = arith.constant dense<0.000000e+00> : vector<2x128xf32>
    %266 = tpu.matmul %250, %31, %cst_33 {dimension_numbers = #tpu.dot_dimension_numbers<[1], [0], [0], [1], [0, 0, 1, 1], [], []>} : vector<2x32xf32>, vector<32x128xf32>, vector<2x128xf32> -> vector<2x128xf32>
    %267 = arith.addf %265, %266 : vector<2x128xf32>
    %268 = tpu.concatenate %250, %264 in 1 : vector<2x32xf32>, vector<2x32xf32> -> vector<2x64xf32>
    %cst_34 = arith.constant dense<0.000000e+00> : vector<2x128xf32>
    %269 = tpu.matmul %268, %32, %cst_34 {dimension_numbers = #tpu.dot_dimension_numbers<[1], [0], [0], [1], [0, 0, 1, 1], [], []>} : vector<2x64xf32>, vector<64x128xf32>, vector<2x128xf32> -> vector<2x128xf32>
    %270 = vector.broadcast %33 : vector<1x128xf32> to vector<2x128xf32>
    %271 = arith.addf %270, %269 : vector<2x128xf32>
    %272 = math.tanh %267 : vector<2x128xf32>
    %273 = vector.broadcast %27 : vector<1x128xf32> to vector<2x128xf32>
    %274 = arith.mulf %272, %273 : vector<2x128xf32>
    %275 = vector.broadcast %30 : vector<1x128xf32> to vector<2x128xf32>
    %276 = arith.addf %274, %275 : vector<2x128xf32>
    %277 = vector.extract_strided_slice %276 {offsets = [0, 0], sizes = [2, 32], strides = [1, 1]} : vector<2x128xf32> to vector<2x32xf32>
    %278 = vector.extract_strided_slice %276 {offsets = [0, 32], sizes = [2, 32], strides = [1, 1]} : vector<2x128xf32> to vector<2x32xf32>
    %279 = vector.extract_strided_slice %276 {offsets = [0, 64], sizes = [2, 32], strides = [1, 1]} : vector<2x128xf32> to vector<2x32xf32>
    %280 = vector.extract_strided_slice %276 {offsets = [0, 96], sizes = [2, 32], strides = [1, 1]} : vector<2x128xf32> to vector<2x32xf32>
    %281 = arith.mulf %278, %248 : vector<2x32xf32>
    %282 = arith.mulf %277, %279 : vector<2x32xf32>
    %283 = arith.addf %281, %282 : vector<2x32xf32>
    %284 = math.tanh %283 : vector<2x32xf32>
    %285 = arith.mulf %280, %284 : vector<2x32xf32>
    %286 = math.tanh %271 : vector<2x128xf32>
    %287 = vector.broadcast %27 : vector<1x128xf32> to vector<2x128xf32>
    %288 = arith.mulf %286, %287 : vector<2x128xf32>
    %289 = vector.broadcast %30 : vector<1x128xf32> to vector<2x128xf32>
    %290 = arith.addf %288, %289 : vector<2x128xf32>
    %291 = vector.extract_strided_slice %290 {offsets = [0, 0], sizes = [2, 32], strides = [1, 1]} : vector<2x128xf32> to vector<2x32xf32>
    %292 = vector.extract_strided_slice %290 {offsets = [0, 32], sizes = [2, 32], strides = [1, 1]} : vector<2x128xf32> to vector<2x32xf32>
    %293 = vector.extract_strided_slice %290 {offsets = [0, 64], sizes = [2, 32], strides = [1, 1]} : vector<2x128xf32> to vector<2x32xf32>
    %294 = vector.extract_strided_slice %290 {offsets = [0, 96], sizes = [2, 32], strides = [1, 1]} : vector<2x128xf32> to vector<2x32xf32>
    %295 = arith.mulf %292, %262 : vector<2x32xf32>
    %296 = arith.mulf %291, %293 : vector<2x32xf32>
    %297 = arith.addf %295, %296 : vector<2x32xf32>
    %298 = math.tanh %297 : vector<2x32xf32>
    %299 = arith.mulf %294, %298 : vector<2x32xf32>
    %300 = tpu.concatenate %285, %299 in 1 : vector<2x32xf32>, vector<2x32xf32> -> vector<2x64xf32>
    %cst_35 = arith.constant dense<0.000000e+00> : vector<2x128xf32>
    %301 = tpu.matmul %300, %32, %cst_35 {dimension_numbers = #tpu.dot_dimension_numbers<[1], [0], [0], [1], [0, 0, 1, 1], [], []>} : vector<2x64xf32>, vector<64x128xf32>, vector<2x128xf32> -> vector<2x128xf32>
    %302 = vector.broadcast %33 : vector<1x128xf32> to vector<2x128xf32>
    %303 = arith.addf %302, %301 : vector<2x128xf32>
    %304 = math.tanh %303 : vector<2x128xf32>
    %305 = vector.broadcast %27 : vector<1x128xf32> to vector<2x128xf32>
    %306 = arith.mulf %304, %305 : vector<2x128xf32>
    %307 = vector.broadcast %30 : vector<1x128xf32> to vector<2x128xf32>
    %308 = arith.addf %306, %307 : vector<2x128xf32>
    %309 = vector.extract_strided_slice %308 {offsets = [0, 0], sizes = [2, 32], strides = [1, 1]} : vector<2x128xf32> to vector<2x32xf32>
    %310 = vector.extract_strided_slice %308 {offsets = [0, 32], sizes = [2, 32], strides = [1, 1]} : vector<2x128xf32> to vector<2x32xf32>
    %311 = vector.extract_strided_slice %308 {offsets = [0, 64], sizes = [2, 32], strides = [1, 1]} : vector<2x128xf32> to vector<2x32xf32>
    %312 = vector.extract_strided_slice %308 {offsets = [0, 96], sizes = [2, 32], strides = [1, 1]} : vector<2x128xf32> to vector<2x32xf32>
    %313 = arith.mulf %310, %297 : vector<2x32xf32>
    %314 = arith.mulf %309, %311 : vector<2x32xf32>
    %315 = arith.addf %313, %314 : vector<2x32xf32>
    %316 = math.tanh %315 : vector<2x32xf32>
    %317 = arith.mulf %312, %316 : vector<2x32xf32>
    %c272 = arith.constant 272 : index
    %c0_36 = arith.constant 0 : index
    %318 = vector.load %arg2[%c272, %c0_36] : memref<448x128xf32, #tpu.memory_space<vmem>>, vector<32x128xf32>
    %cst_37 = arith.constant dense<0.000000e+00> : vector<2x128xf32>
    %319 = tpu.matmul %317, %318, %cst_37 {dimension_numbers = #tpu.dot_dimension_numbers<[1], [0], [0], [1], [0, 0, 1, 1], [], []>} : vector<2x32xf32>, vector<32x128xf32>, vector<2x128xf32> -> vector<2x128xf32>
    %c304 = arith.constant 304 : index
    %c0_38 = arith.constant 0 : index
    %320 = vector.load %arg2[%c304, %c0_38] : memref<448x128xf32, #tpu.memory_space<vmem>>, vector<1x128xf32>
    %321 = vector.broadcast %320 : vector<1x128xf32> to vector<2x128xf32>
    %322 = arith.addf %319, %321 : vector<2x128xf32>
    %cst_39 = arith.constant 0.000000e+00 : f32
    %323 = vector.broadcast %cst_39 : f32 to vector<2x128xf32>
    %324 = arith.maximumf %322, %323 : vector<2x128xf32>
    %c312 = arith.constant 312 : index
    %c0_40 = arith.constant 0 : index
    %325 = vector.load %arg2[%c312, %c0_40] : memref<448x128xf32, #tpu.memory_space<vmem>>, vector<128x128xf32>
    %cst_41 = arith.constant dense<0.000000e+00> : vector<2x128xf32>
    %326 = tpu.matmul %324, %325, %cst_41 {dimension_numbers = #tpu.dot_dimension_numbers<[1], [0], [0], [1], [0, 0, 1, 1], [], []>} : vector<2x128xf32>, vector<128x128xf32>, vector<2x128xf32> -> vector<2x128xf32>
    %c440 = arith.constant 440 : index
    %c0_42 = arith.constant 0 : index
    %327 = vector.load %arg2[%c440, %c0_42] : memref<448x128xf32, #tpu.memory_space<vmem>>, vector<1x128xf32>
    %328 = vector.broadcast %327 : vector<1x128xf32> to vector<2x128xf32>
    %329 = arith.addf %326, %328 : vector<2x128xf32>
    %330 = vector.extract_strided_slice %329 {offsets = [0, 0], sizes = [2, 8], strides = [1, 1]} : vector<2x128xf32> to vector<2x8xf32>
    %c0_43 = arith.constant 0 : index
    %c0_44 = arith.constant 0 : index
    %331 = vector.load %arg3[%c0_43, %c0_44] : memref<2x8xf32, #tpu.memory_space<vmem>>, vector<2x8xf32>
    tpu.vector_store %arg3[%c0_43, %c0_44], %330 {strides = array<i32>} : memref<2x8xf32, #tpu.memory_space<vmem>>, vector<2x8xf32>,
    return
  }
  func.func @transform_0(%arg0: i32) -> (i32, i32, i32) {
    %c0_i32 = arith.constant 0 : i32
    %c0_i32_0 = arith.constant 0 : i32
    %c0_i32_1 = arith.constant 0 : i32
    return %c0_i32, %arg0, %c0_i32_0 : i32, i32, i32
  }
  func.func @transform_1(%arg0: i32) -> (i32, i32) {
    %c0_i32 = arith.constant 0 : i32
    %c0_i32_0 = arith.constant 0 : i32
    %c0_i32_1 = arith.constant 0 : i32
    return %c0_i32, %c0_i32_0 : i32, i32
  }
  func.func @transform_2(%arg0: i32) -> (i32, i32) {
    %c0_i32 = arith.constant 0 : i32
    %c0_i32_0 = arith.constant 0 : i32
    return %arg0, %c0_i32 : i32, i32
  }
}

</mosaic_0001>

<llo_original>
// kernel: tpu_custom_call.1
$region0: #{tpu_custom_call.1}
  #allocation0 [shape = 'u32[]', space=smem, size = 0x4, offset = 0x4, fixed_abs, tag = 'smem constant byte address 0x4 - core index']
  #allocation1 [shape = 'u32[72,128]{1,0:T(1,128)}', space=vmem, size = 0x9000, scoped, tag = 'internal scratch']
  %s0 = inlined_call_operand.hbm [shape: f32[8,2,24], index: 0, kind: input, shape index: {}]
  %s1 = inlined_call_operand.hbm [shape: f32[448,128], index: 1, kind: input, shape index: {}]
  %s2 = inlined_call_operand.hbm [shape: f32[2,8], index: 2, kind: output, shape index: {}]
  %s3 = sld [smem:[#allocation0]]
  $region26: #{tpu_custom_call.1} parent=0
    _
  %s5 = ssub.s32 1, %s3
  %s6 = scalar_select 0, %s5, %s3
  $region1: #{tpu_custom_call.1} parent=0
    #allocation2 [shape = 'u8[8192]{0}', space=vmem, size = 0x2000, scoped, tag = 'input window, operand 0, single buffered']
    #allocation3 [shape = 's32[1]{0}', space=sflag, size = 0x4, scoped, tag = 'scoped memory for tpu_custom_call.1']
    #allocation4 [shape = 's32[1]{0}', space=sflag, size = 0x4, scoped, tag = 'scoped memory for tpu_custom_call.1']
    #allocation5 [shape = 'u8[229376]{0}', space=vmem, size = 0x38000, scoped, tag = 'input window, operand 1, single buffered']
    #allocation6 [shape = 's32[1]{0}', space=sflag, size = 0x4, scoped, tag = 'scoped memory for tpu_custom_call.1']
    #allocation7 [shape = 'u8[1024]{0}', space=vmem, size = 0x400, scoped, tag = 'output window, operand 0, single buffered']
    %7 = vsyncpa [#allocation3], 0
    %8 = vsyncpa [#allocation6], 0
    %9 = vsyncpa [#allocation4], 0
    // Predicated region
    $region2: #{tpu_custom_call.1} parent=1 // pred_check
      _
    $region3: #{tpu_custom_call.1} parent=1 // pred_check_branch
      %11 = sbr.rel (0) target = $region5
    $region4: #{tpu_custom_call.1} parent=1 // pred_region
      %13 = vsyncadd [#allocation3], 0
      %s14 = sshll.u32 %s0, 4
      %s15 = int_to_ptr.hbm [resolvable:$true] %s14
      %s16 = sshll.u32 [#allocation2], 4
      %s17 = int_to_ptr.vmem [resolvable:$true] %s16
      %22 = dma.hbm_to_vmem [thread:$0]  %s15, 256, %s17, [#allocation3], 32, 32, 2
    $region5: #{tpu_custom_call.1} parent=1 // pred_fallthru
      _
    // Predicated region
    $region6: #{tpu_custom_call.1} parent=1 // pred_check
      _
    $region7: #{tpu_custom_call.1} parent=1 // pred_check_branch
      %24 = sbr.rel (0) target = $region9
    $region8: #{tpu_custom_call.1} parent=1 // pred_region
      %26 = vsyncadd [#allocation6], 0
      %s27 = sshll.u32 %s1, 4
      %s28 = int_to_ptr.hbm [resolvable:$true] %s27
      %s29 = sshll.u32 [#allocation5], 4
      %s30 = int_to_ptr.vmem [resolvable:$true] %s29
      %35 = dma.hbm_to_vmem [thread:$0]  %s28, 7168, %s30, [#allocation6], 128, 128, 8
    $region9: #{tpu_custom_call.1} parent=1 // pred_fallthru
      _
    // Predicated region
    $region10: #{tpu_custom_call.1} parent=1 // pred_check
      _
    $region11: #{tpu_custom_call.1} parent=1 // pred_check_branch
      %37 = sbr.rel (0) target = $region13
    $region12: #{tpu_custom_call.1} parent=1 // pred_region
      %39 = dma.done [#allocation3], 256
    $region13: #{tpu_custom_call.1} parent=1 // pred_fallthru
      _
    // Predicated region
    $region14: #{tpu_custom_call.1} parent=1 // pred_check
      _
    $region15: #{tpu_custom_call.1} parent=1 // pred_check_branch
      %41 = sbr.rel (0) target = $region17
    $region16: #{tpu_custom_call.1} parent=1 // pred_region
      %43 = dma.done [#allocation6], 7168
    $region17: #{tpu_custom_call.1} parent=1 // pred_fallthru
      _
    %v44 = vld [vmem:[#allocation2] sm:$0x3]
    %v45 = vld [vmem:[#allocation2 + $0x2] sm:$0x3]
    %v46 = vld [vmem:[#allocation2 + $0x4] sm:$0x3]
    %v47 = vld [vmem:[#allocation2 + $0x6] sm:$0x3]
    %v48 = vld [vmem:[#allocation2 + $0x8] sm:$0x3]
    %v49 = vld [vmem:[#allocation2 + $0xa] sm:$0x3]
    %v50 = vld [vmem:[#allocation2 + $0xc] sm:$0x3]
    %v51 = vld [vmem:[#allocation2 + $0xe] sm:$0x3]
    %v52 = vlaneseq
    %v53 = vand.u32 %v52, 127
    %v54 = vld [vmem:[#allocation5] sm:$0xff]
    %v55 = vld [vmem:[#allocation5 + $0x8] sm:$0xff]
    %v56 = vld [vmem:[#allocation5 + $0x10] sm:$0xff]
    %v57 = vld [vmem:[#allocation5 + $0x18] sm:$0x1]
    %v58 = vperm.slane %v57, 0
    %67 = vst [vmem:[#allocation1] ss:$4 sm:$0xff] %v44
    %s68 = scalar_lea.vmem [#allocation1], 1
    %69 = vst [vmem:[%s68] ss:$4 sm:$0xff] %v45
    %s70 = scalar_lea.vmem [#allocation1], 2
    %71 = vst [vmem:[%s70] ss:$4 sm:$0xff] %v46
    %s72 = scalar_lea.vmem [#allocation1], 3
    %73 = vst [vmem:[%s72] ss:$4 sm:$0xff] %v47
    %s74 = scalar_lea.vmem [#allocation1], 32
    %75 = vst [vmem:[%s74] ss:$4 sm:$0xff] %v48
    %s76 = scalar_lea.vmem [#allocation1], 33
    %77 = vst [vmem:[%s76] ss:$4 sm:$0xff] %v49
    %s78 = scalar_lea.vmem [#allocation1], 34
    %79 = vst [vmem:[%s78] ss:$4 sm:$0xff] %v50
    %s80 = scalar_lea.vmem [#allocation1], 35
    %81 = vst [vmem:[%s80] ss:$4 sm:$0xff] %v51
    %v82 = vld.sshfl [vmem:[#allocation1] sm:$0xff pattern:$0x73625140]
    %v83 = vld.sshfl [vmem:[#allocation1 + $0x20] sm:$0xff pattern:$0x73625140]
    %vm84 = vcmask 195584
    %v85 = vsel %vm84, %v82, 0
    %v87 = vsel %vm84, %v83, 0
    %89 = vmatpush.msra.mxu0 0.0
    %90 = vmatpush.msra.mxu0 0.0
    %91 = vmatpush.msra.mxu0 0.0
    %92 = vmatpush.msra.mxu0 0.0
    %93 = vmatpush.msra.mxu0 0.0
    %94 = vmatpush.msra.mxu0 0.0
    %95 = vmatpush.msra.mxu0 0.0
    %96 = vmatpush.msra.mxu0 0.0
    %97 = vmatpush.msra.mxu0 0.0
    %98 = vmatpush.msra.mxu0 0.0
    %99 = vmatpush.msra.mxu0 0.0
    %100 = vmatpush.msra.mxu0 0.0
    %101 = vmatpush.msra.mxu0 0.0
    %102 = vmatpush.msra.mxu0 %v56
    %103 = vmatpush.msra.mxu0 %v55
    %104 = vmatpush.msra.mxu0 %v54
    %105 = vmatmul.f32.gmra.mxu0 %v85
    %v106 = vpop.f32.mrf.mxu0
    %v107 = vadd.f32 %v58, %v106
    %108 = vmatmul.f32.gmra.mxu0 %v87
    %v109 = vpop.f32.mrf.mxu0
    %v110 = vadd.f32 %v58, %v109
    %111 = vdwg.mxu0
    %vm112 = vcmp.ge.s32.totalorder %v53, 2
    %v113 = vmax.f32 %v107, 0.0
    %v114 = vmax.f32 %v110, 0.0
    %v115 = vsel %vm112, 1, 0
    %vm116 = vcmp.eq.s32.totalorder %v115, 1
    %v117 = vsel %vm116, %v113, %v107
    %v118 = vsel %vm116, %v114, %v110
    %v119 = vld [vmem:[#allocation5 + $0x20] sm:$0xff]
    %v120 = vld [vmem:[#allocation5 + $0x28] sm:$0xff]
    %v121 = vld [vmem:[#allocation5 + $0x30] sm:$0xff]
    %v122 = vld [vmem:[#allocation5 + $0x38] sm:$0xff]
    %v123 = vld [vmem:[#allocation5 + $0x40] sm:$0xff]
    %v124 = vld [vmem:[#allocation5 + $0x48] sm:$0xff]
    %v125 = vld [vmem:[#allocation5 + $0x50] sm:$0xff]
    %v126 = vld [vmem:[#allocation5 + $0x58] sm:$0xff]
    %v127 = vld [vmem:[#allocation5 + $0x60] sm:$0xff]
    %v128 = vld [vmem:[#allocation5 + $0x68] sm:$0xff]
    %v129 = vld [vmem:[#allocation5 + $0x70] sm:$0xff]
    %v130 = vld [vmem:[#allocation5 + $0x78] sm:$0xff]
    %v131 = vld [vmem:[#allocation5 + $0x80] sm:$0xff]
    %v132 = vld [vmem:[#allocation5 + $0x88] sm:$0xff]
    %v133 = vld [vmem:[#allocation5 + $0x90] sm:$0xff]
    %v134 = vld [vmem:[#allocation5 + $0x98] sm:$0xff]
    %v135 = vld [vmem:[#allocation5 + $0xa0] sm:$0x1]
    %v136 = vperm.slane %v135, 0
    %137 = vmatpush.msra.mxu0 %v134
    %138 = vmatpush.msra.mxu0 %v133
    %139 = vmatpush.msra.mxu0 %v132
    %140 = vmatpush.msra.mxu0 %v131
    %141 = vmatpush.msra.mxu0 %v130
    %142 = vmatpush.msra.mxu0 %v129
    %143 = vmatpush.msra.mxu0 %v128
    %144 = vmatpush.msra.mxu0 %v127
    %145 = vmatpush.msra.mxu0 %v126
    %146 = vmatpush.msra.mxu0 %v125
    %147 = vmatpush.msra.mxu0 %v124
    %148 = vmatpush.msra.mxu0 %v123
    %149 = vmatpush.msra.mxu0 %v122
    %150 = vmatpush.msra.mxu0 %v121
    %151 = vmatpush.msra.mxu0 %v120
    %152 = vmatpush.msra.mxu0 %v119
    %153 = vmatmul.f32.gmra.mxu0 %v117
    %v154 = vpop.f32.mrf.mxu0
    %v155 = vadd.f32 %v136, %v154
    %156 = vmatmul.f32.gmra.mxu0 %v118
    %v157 = vpop.f32.mrf.mxu0
    %v158 = vadd.f32 %v136, %v157
    %159 = vdwg.mxu0
    %vm160 = vcmp.ge.s32.totalorder %v53, 64
    %vm161 = vcmp.lt.s32.totalorder %v53, 96
    %vm162 = vmand %vm160, %vm161
    %v163 = vsel %vm162, 1.0, 0.5
    %v164 = vsel %vm162, 0.0, 0.5
    %v165 = vld [vmem:[#allocation5 + $0xa8] sm:$0xff]
    %v166 = vld [vmem:[#allocation5 + $0xb0] sm:$0xff]
    %v167 = vld [vmem:[#allocation5 + $0xb8] sm:$0xff]
    %v168 = vld [vmem:[#allocation5 + $0xc0] sm:$0xff]
    %v169 = vld [vmem:[#allocation5 + $0xc8] sm:$0xff]
    %v170 = vld [vmem:[#allocation5 + $0xd0] sm:$0xff]
    %v171 = vld [vmem:[#allocation5 + $0xd8] sm:$0xff]
    %v172 = vld [vmem:[#allocation5 + $0xe0] sm:$0xff]
    %v173 = vld [vmem:[#allocation5 + $0xe8] sm:$0xff]
    %v174 = vld [vmem:[#allocation5 + $0xf0] sm:$0xff]
    %v175 = vld [vmem:[#allocation5 + $0xf8] sm:$0xff]
    %v176 = vld [vmem:[#allocation5 + $0x100] sm:$0xff]
    %v177 = vld [vmem:[#allocation5 + $0x108] sm:$0x1]
    %vm178 = vcmask 261120
    %v180 = vsel %vm178, 0.0, 0
    %182 = vmatpush.msra.mxu0 0.0
    %183 = vmatpush.msra.mxu0 0.0
    %184 = vmatpush.msra.mxu0 0.0
    %185 = vmatpush.msra.mxu0 0.0
    %186 = vmatpush.msra.mxu0 0.0
    %187 = vmatpush.msra.mxu0 0.0
    %188 = vmatpush.msra.mxu0 0.0
    %189 = vmatpush.msra.mxu0 0.0
    %190 = vmatpush.msra.mxu0 0.0
    %191 = vmatpush.msra.mxu0 0.0
    %192 = vmatpush.msra.mxu0 0.0
    %193 = vmatpush.msra.mxu0 0.0
    %194 = vmatpush.msra.mxu0 %v168
    %195 = vmatpush.msra.mxu0 %v167
    %196 = vmatpush.msra.mxu0 %v166
    %197 = vmatpush.msra.mxu0 %v165
    %198 = vmatmul.f32.gmra.mxu0 %v180
    %v199 = vpop.f32.mrf.mxu0
    %v200 = vadd.f32 0.0, %v199
    %201 = vdwg.mxu0
    %v202 = vadd.f32 %v155, %v200
    %v203 = vtanh.pop %v202
    %v204 = vmul.f32 %v203, %v163
    %v205 = vadd.f32 %v204, %v164
    %v206 = vmul.f32 %v205, 0.0
    %208 = vrot.lane.b32.xlu0 %v205, 64
    %v209 = vpop.permute.xlu0 %208
    %v211 = vmul.f32 %v205, %v209
    %213 = vrot.lane.b32.xlu0 %v211, 32
    %v214 = vpop.permute.xlu0 %213
    %v216 = vadd.f32 %v206, %v214
    %v217 = vtanh.pop %v216
    %219 = vrot.lane.b32.xlu0 %v217, 64
    %v220 = vpop.permute.xlu0 %219
    %v222 = vmul.f32 %v205, %v220
    %224 = vrot.lane.b32.xlu0 %v222, 32
    %v225 = vpop.permute.xlu0 %224
    %v226 = vsel %vm178, %v225, 0
    %228 = vmatpush.msra.mxu0 0.0
    %229 = vmatpush.msra.mxu0 0.0
    %230 = vmatpush.msra.mxu0 0.0
    %231 = vmatpush.msra.mxu0 0.0
    %232 = vmatpush.msra.mxu0 0.0
    %233 = vmatpush.msra.mxu0 0.0
    %234 = vmatpush.msra.mxu0 0.0
    %235 = vmatpush.msra.mxu0 0.0
    %236 = vmatpush.msra.mxu0 0.0
    %237 = vmatpush.msra.mxu0 0.0
    %238 = vmatpush.msra.mxu0 0.0
    %239 = vmatpush.msra.mxu0 0.0
    %240 = vmatpush.msra.mxu0 %v168
    %241 = vmatpush.msra.mxu0 %v167
    %242 = vmatpush.msra.mxu0 %v166
    %243 = vmatpush.msra.mxu0 %v165
    %244 = vmatmul.f32.gmra.mxu0 %v226
    %v245 = vpop.f32.mrf.mxu0
    %v246 = vadd.f32 0.0, %v245
    %247 = vdwg.mxu0
    %v249 = vrot.slane %v246, 6
    %v251 = vadd.f32 %v155, %v249
    %v253 = vsel %vm178, %v225, 0.0
    %vm254 = vcmask 523264
    %v256 = vsel %vm254, %v253, 0
    %258 = vmatpush.msra.mxu0 0.0
    %259 = vmatpush.msra.mxu0 0.0
    %260 = vmatpush.msra.mxu0 0.0
    %261 = vmatpush.msra.mxu0 0.0
    %262 = vmatpush.msra.mxu0 0.0
    %263 = vmatpush.msra.mxu0 0.0
    %264 = vmatpush.msra.mxu0 0.0
    %265 = vmatpush.msra.mxu0 0.0
    %266 = vmatpush.msra.mxu0 %v176
    %267 = vmatpush.msra.mxu0 %v175
    %268 = vmatpush.msra.mxu0 %v174
    %269 = vmatpush.msra.mxu0 %v173
    %270 = vmatpush.msra.mxu0 %v172
    %271 = vmatpush.msra.mxu0 %v171
    %272 = vmatpush.msra.mxu0 %v170
    %273 = vmatpush.msra.mxu0 %v169
    %274 = vmatmul.f32.gmra.mxu0 %v256
    %v275 = vpop.f32.mrf.mxu0
    %v276 = vadd.f32 0.0, %v275
    %277 = vdwg.mxu0
    %v278 = vperm.slane %v177, 0
    %v279 = vadd.f32 %v278, %v276
    %v280 = vtanh.pop %v251
    %v281 = vmul.f32 %v280, %v163
    %v282 = vadd.f32 %v281, %v164
    %v284 = vrot.slane %v216, 6
    %v286 = vmul.f32 %v282, %v284
    %288 = vrot.lane.b32.xlu0 %v282, 64
    %v289 = vpop.permute.xlu0 %288
    %v291 = vmul.f32 %v282, %v289
    %293 = vrot.lane.b32.xlu0 %v291, 32
    %v294 = vpop.permute.xlu0 %293
    %v296 = vadd.f32 %v286, %v294
    %v297 = vtanh.pop %v296
    %299 = vrot.lane.b32.xlu0 %v297, 64
    %v300 = vpop.permute.xlu0 %299
    %v302 = vmul.f32 %v282, %v300
    %v303 = vtanh.pop %v279
    %v304 = vmul.f32 %v303, %v163
    %v305 = vadd.f32 %v304, %v164
    %v306 = vmul.f32 %v305, 0.0
    %308 = vrot.lane.b32.xlu0 %v305, 64
    %v309 = vpop.permute.xlu0 %308
    %v311 = vmul.f32 %v305, %v309
    %313 = vrot.lane.b32.xlu0 %v311, 32
    %v314 = vpop.permute.xlu0 %313
    %v316 = vadd.f32 %v306, %v314
    %v317 = vtanh.pop %v316
    %319 = vrot.lane.b32.xlu0 %v317, 64
    %v320 = vpop.permute.xlu0 %319
    %v322 = vmul.f32 %v305, %v320
    %v324 = vrot.slane %v302, 2
    %325 = vrot.lane.b32.xlu0 %v324, 32
    %v326 = vpop.permute.xlu0 %325
    %v327 = vsel %vm178, %v326, 0
    %329 = vmatpush.msra.mxu0 0.0
    %330 = vmatpush.msra.mxu0 0.0
    %331 = vmatpush.msra.mxu0 0.0
    %332 = vmatpush.msra.mxu0 0.0
    %333 = vmatpush.msra.mxu0 0.0
    %334 = vmatpush.msra.mxu0 0.0
    %335 = vmatpush.msra.mxu0 0.0
    %336 = vmatpush.msra.mxu0 0.0
    %337 = vmatpush.msra.mxu0 0.0
    %338 = vmatpush.msra.mxu0 0.0
    %339 = vmatpush.msra.mxu0 0.0
    %340 = vmatpush.msra.mxu0 0.0
    %341 = vmatpush.msra.mxu0 %v168
    %342 = vmatpush.msra.mxu0 %v167
    %343 = vmatpush.msra.mxu0 %v166
    %344 = vmatpush.msra.mxu0 %v165
    %345 = vmatmul.f32.gmra.mxu0 %v327
    %v346 = vpop.f32.mrf.mxu0
    %v347 = vadd.f32 0.0, %v346
    %348 = vdwg.mxu0
    %v350 = vrot.slane %v347, 4
    %v352 = vadd.f32 %v155, %v350
    %353 = vrot.lane.b32.xlu0 %v302, 32
    %v354 = vpop.permute.xlu0 %353
    %v357 = vrot.slane %v322, 6
    %358 = vrot.lane.b32.xlu0 %v357, 64
    %v359 = vpop.permute.xlu0 %358
    %v361 = vsel %vm178, %v354, %v359
    %v363 = vrot.slane %v361, 2
    %v364 = vsel %vm254, %v363, 0
    %366 = vmatpush.msra.mxu0 0.0
    %367 = vmatpush.msra.mxu0 0.0
    %368 = vmatpush.msra.mxu0 0.0
    %369 = vmatpush.msra.mxu0 0.0
    %370 = vmatpush.msra.mxu0 0.0
    %371 = vmatpush.msra.mxu0 0.0
    %372 = vmatpush.msra.mxu0 0.0
    %373 = vmatpush.msra.mxu0 0.0
    %374 = vmatpush.msra.mxu0 %v176
    %375 = vmatpush.msra.mxu0 %v175
    %376 = vmatpush.msra.mxu0 %v174
    %377 = vmatpush.msra.mxu0 %v173
    %378 = vmatpush.msra.mxu0 %v172
    %379 = vmatpush.msra.mxu0 %v171
    %380 = vmatpush.msra.mxu0 %v170
    %381 = vmatpush.msra.mxu0 %v169
    %382 = vmatmul.f32.gmra.mxu0 %v364
    %v383 = vpop.f32.mrf.mxu0
    %v384 = vadd.f32 0.0, %v383
    %385 = vdwg.mxu0
    %v386 = vadd.f32 %v278, %v384
    %v387 = vtanh.pop %v352
    %v388 = vmul.f32 %v387, %v163
    %v389 = vadd.f32 %v388, %v164
    %v391 = vrot.slane %v296, 6
    %v393 = vmul.f32 %v389, %v391
    %395 = vrot.lane.b32.xlu0 %v389, 64
    %v396 = vpop.permute.xlu0 %395
    %v398 = vmul.f32 %v389, %v396
    %400 = vrot.lane.b32.xlu0 %v398, 32
    %v401 = vpop.permute.xlu0 %400
    %v403 = vadd.f32 %v393, %v401
    %v404 = vtanh.pop %v403
    %406 = vrot.lane.b32.xlu0 %v404, 64
    %v407 = vpop.permute.xlu0 %406
    %v409 = vmul.f32 %v389, %v407
    %v410 = vtanh.pop %v386
    %v411 = vmul.f32 %v410, %v163
    %v412 = vadd.f32 %v411, %v164
    %v413 = vmul.f32 %v412, %v316
    %415 = vrot.lane.b32.xlu0 %v412, 64
    %v416 = vpop.permute.xlu0 %415
    %v418 = vmul.f32 %v412, %v416
    %420 = vrot.lane.b32.xlu0 %v418, 32
    %v421 = vpop.permute.xlu0 %420
    %v423 = vadd.f32 %v413, %v421
    %v424 = vtanh.pop %v423
    %426 = vrot.lane.b32.xlu0 %v424, 64
    %v427 = vpop.permute.xlu0 %426
    %v429 = vmul.f32 %v412, %v427
    %v431 = vrot.slane %v409, 4
    %432 = vrot.lane.b32.xlu0 %v431, 32
    %v433 = vpop.permute.xlu0 %432
    %v434 = vsel %vm178, %v433, 0
    %436 = vmatpush.msra.mxu0 0.0
    %437 = vmatpush.msra.mxu0 0.0
    %438 = vmatpush.msra.mxu0 0.0
    %439 = vmatpush.msra.mxu0 0.0
    %440 = vmatpush.msra.mxu0 0.0
    %441 = vmatpush.msra.mxu0 0.0
    %442 = vmatpush.msra.mxu0 0.0
    %443 = vmatpush.msra.mxu0 0.0
    %444 = vmatpush.msra.mxu0 0.0
    %445 = vmatpush.msra.mxu0 0.0
    %446 = vmatpush.msra.mxu0 0.0
    %447 = vmatpush.msra.mxu0 0.0
    %448 = vmatpush.msra.mxu0 %v168
    %449 = vmatpush.msra.mxu0 %v167
    %450 = vmatpush.msra.mxu0 %v166
    %451 = vmatpush.msra.mxu0 %v165
    %452 = vmatmul.f32.gmra.mxu0 %v434
    %v453 = vpop.f32.mrf.mxu0
    %v454 = vadd.f32 0.0, %v453
    %455 = vdwg.mxu0
    %v457 = vrot.slane %v454, 2
    %v459 = vadd.f32 %v155, %v457
    %460 = vrot.lane.b32.xlu0 %v409, 32
    %v461 = vpop.permute.xlu0 %460
    %v464 = vrot.slane %v429, 4
    %465 = vrot.lane.b32.xlu0 %v464, 64
    %v466 = vpop.permute.xlu0 %465
    %v468 = vsel %vm178, %v461, %v466
    %v470 = vrot.slane %v468, 4
    %v471 = vsel %vm254, %v470, 0
    %473 = vmatpush.msra.mxu0 0.0
    %474 = vmatpush.msra.mxu0 0.0
    %475 = vmatpush.msra.mxu0 0.0
    %476 = vmatpush.msra.mxu0 0.0
    %477 = vmatpush.msra.mxu0 0.0
    %478 = vmatpush.msra.mxu0 0.0
    %479 = vmatpush.msra.mxu0 0.0
    %480 = vmatpush.msra.mxu0 0.0
    %481 = vmatpush.msra.mxu0 %v176
    %482 = vmatpush.msra.mxu0 %v175
    %483 = vmatpush.msra.mxu0 %v174
    %484 = vmatpush.msra.mxu0 %v173
    %485 = vmatpush.msra.mxu0 %v172
    %486 = vmatpush.msra.mxu0 %v171
    %487 = vmatpush.msra.mxu0 %v170
    %488 = vmatpush.msra.mxu0 %v169
    %489 = vmatmul.f32.gmra.mxu0 %v471
    %v490 = vpop.f32.mrf.mxu0
    %v491 = vadd.f32 0.0, %v490
    %492 = vdwg.mxu0
    %v493 = vadd.f32 %v278, %v491
    %v494 = vtanh.pop %v459
    %v495 = vmul.f32 %v494, %v163
    %v496 = vadd.f32 %v495, %v164
    %v498 = vrot.slane %v403, 6
    %v500 = vmul.f32 %v496, %v498
    %502 = vrot.lane.b32.xlu0 %v496, 64
    %v503 = vpop.permute.xlu0 %502
    %v505 = vmul.f32 %v496, %v503
    %507 = vrot.lane.b32.xlu0 %v505, 32
    %v508 = vpop.permute.xlu0 %507
    %v510 = vadd.f32 %v500, %v508
    %v511 = vtanh.pop %v510
    %513 = vrot.lane.b32.xlu0 %v511, 64
    %v514 = vpop.permute.xlu0 %513
    %v516 = vmul.f32 %v496, %v514
    %v517 = vtanh.pop %v493
    %v518 = vmul.f32 %v517, %v163
    %v519 = vadd.f32 %v518, %v164
    %v520 = vmul.f32 %v519, %v423
    %522 = vrot.lane.b32.xlu0 %v519, 64
    %v523 = vpop.permute.xlu0 %522
    %v525 = vmul.f32 %v519, %v523
    %527 = vrot.lane.b32.xlu0 %v525, 32
    %v528 = vpop.permute.xlu0 %527
    %v530 = vadd.f32 %v520, %v528
    %v531 = vtanh.pop %v530
    %533 = vrot.lane.b32.xlu0 %v531, 64
    %v534 = vpop.permute.xlu0 %533
    %v536 = vmul.f32 %v519, %v534
    %v538 = vrot.slane %v516, 6
    %539 = vrot.lane.b32.xlu0 %v538, 32
    %v540 = vpop.permute.xlu0 %539
    %v541 = vsel %vm178, %v540, 0
    %543 = vmatpush.msra.mxu0 0.0
    %544 = vmatpush.msra.mxu0 0.0
    %545 = vmatpush.msra.mxu0 0.0
    %546 = vmatpush.msra.mxu0 0.0
    %547 = vmatpush.msra.mxu0 0.0
    %548 = vmatpush.msra.mxu0 0.0
    %549 = vmatpush.msra.mxu0 0.0
    %550 = vmatpush.msra.mxu0 0.0
    %551 = vmatpush.msra.mxu0 0.0
    %552 = vmatpush.msra.mxu0 0.0
    %553 = vmatpush.msra.mxu0 0.0
    %554 = vmatpush.msra.mxu0 0.0
    %555 = vmatpush.msra.mxu0 %v168
    %556 = vmatpush.msra.mxu0 %v167
    %557 = vmatpush.msra.mxu0 %v166
    %558 = vmatpush.msra.mxu0 %v165
    %559 = vmatmul.f32.gmra.mxu0 %v541
    %v560 = vpop.f32.mrf.mxu0
    %v561 = vadd.f32 0.0, %v560
    %562 = vdwg.mxu0
    %v563 = vadd.f32 %v158, %v561
    %564 = vrot.lane.b32.xlu0 %v516, 32
    %v565 = vpop.permute.xlu0 %564
    %v568 = vrot.slane %v536, 2
    %569 = vrot.lane.b32.xlu0 %v568, 64
    %v570 = vpop.permute.xlu0 %569
    %v572 = vsel %vm178, %v565, %v570
    %v574 = vrot.slane %v572, 6
    %v575 = vsel %vm254, %v574, 0
    %577 = vmatpush.msra.mxu0 0.0
    %578 = vmatpush.msra.mxu0 0.0
    %579 = vmatpush.msra.mxu0 0.0
    %580 = vmatpush.msra.mxu0 0.0
    %581 = vmatpush.msra.mxu0 0.0
    %582 = vmatpush.msra.mxu0 0.0
    %583 = vmatpush.msra.mxu0 0.0
    %584 = vmatpush.msra.mxu0 0.0
    %585 = vmatpush.msra.mxu0 %v176
    %586 = vmatpush.msra.mxu0 %v175
    %587 = vmatpush.msra.mxu0 %v174
    %588 = vmatpush.msra.mxu0 %v173
    %589 = vmatpush.msra.mxu0 %v172
    %590 = vmatpush.msra.mxu0 %v171
    %591 = vmatpush.msra.mxu0 %v170
    %592 = vmatpush.msra.mxu0 %v169
    %593 = vmatmul.f32.gmra.mxu0 %v575
    %v594 = vpop.f32.mrf.mxu0
    %v595 = vadd.f32 0.0, %v594
    %596 = vdwg.mxu0
    %v597 = vadd.f32 %v278, %v595
    %v598 = vtanh.pop %v563
    %v599 = vmul.f32 %v598, %v163
    %v600 = vadd.f32 %v599, %v164
    %v602 = vrot.slane %v510, 6
    %v604 = vmul.f32 %v600, %v602
    %606 = vrot.lane.b32.xlu0 %v600, 64
    %v607 = vpop.permute.xlu0 %606
    %v609 = vmul.f32 %v600, %v607
    %611 = vrot.lane.b32.xlu0 %v609, 32
    %v612 = vpop.permute.xlu0 %611
    %v614 = vadd.f32 %v604, %v612
    %v615 = vtanh.pop %v614
    %617 = vrot.lane.b32.xlu0 %v615, 64
    %v618 = vpop.permute.xlu0 %617
    %v620 = vmul.f32 %v600, %v618
    %v621 = vtanh.pop %v597
    %v622 = vmul.f32 %v621, %v163
    %v623 = vadd.f32 %v622, %v164
    %v624 = vmul.f32 %v623, %v530
    %626 = vrot.lane.b32.xlu0 %v623, 64
    %v627 = vpop.permute.xlu0 %626
    %v629 = vmul.f32 %v623, %v627
    %631 = vrot.lane.b32.xlu0 %v629, 32
    %v632 = vpop.permute.xlu0 %631
    %v634 = vadd.f32 %v624, %v632
    %v635 = vtanh.pop %v634
    %637 = vrot.lane.b32.xlu0 %v635, 64
    %v638 = vpop.permute.xlu0 %637
    %v640 = vmul.f32 %v623, %v638
    %642 = vrot.lane.b32.xlu0 %v620, 32
    %v643 = vpop.permute.xlu0 %642
    %v644 = vsel %vm178, %v643, 0
    %646 = vmatpush.msra.mxu0 0.0
    %647 = vmatpush.msra.mxu0 0.0
    %648 = vmatpush.msra.mxu0 0.0
    %649 = vmatpush.msra.mxu0 0.0
    %650 = vmatpush.msra.mxu0 0.0
    %651 = vmatpush.msra.mxu0 0.0
    %652 = vmatpush.msra.mxu0 0.0
    %653 = vmatpush.msra.mxu0 0.0
    %654 = vmatpush.msra.mxu0 0.0
    %655 = vmatpush.msra.mxu0 0.0
    %656 = vmatpush.msra.mxu0 0.0
    %657 = vmatpush.msra.mxu0 0.0
    %658 = vmatpush.msra.mxu0 %v168
    %659 = vmatpush.msra.mxu0 %v167
    %660 = vmatpush.msra.mxu0 %v166
    %661 = vmatpush.msra.mxu0 %v165
    %662 = vmatmul.f32.gmra.mxu0 %v644
    %v663 = vpop.f32.mrf.mxu0
    %v664 = vadd.f32 0.0, %v663
    %665 = vdwg.mxu0
    %v667 = vrot.slane %v664, 6
    %v669 = vadd.f32 %v158, %v667
    %672 = vrot.lane.b32.xlu0 %v640, 64
    %v673 = vpop.permute.xlu0 %672
    %v675 = vsel %vm178, %v643, %v673
    %v677 = vsel %vm254, %v675, 0
    %679 = vmatpush.msra.mxu0 0.0
    %680 = vmatpush.msra.mxu0 0.0
    %681 = vmatpush.msra.mxu0 0.0
    %682 = vmatpush.msra.mxu0 0.0
    %683 = vmatpush.msra.mxu0 0.0
    %684 = vmatpush.msra.mxu0 0.0
    %685 = vmatpush.msra.mxu0 0.0
    %686 = vmatpush.msra.mxu0 0.0
    %687 = vmatpush.msra.mxu0 %v176
    %688 = vmatpush.msra.mxu0 %v175
    %689 = vmatpush.msra.mxu0 %v174
    %690 = vmatpush.msra.mxu0 %v173
    %691 = vmatpush.msra.mxu0 %v172
    %692 = vmatpush.msra.mxu0 %v171
    %693 = vmatpush.msra.mxu0 %v170
    %694 = vmatpush.msra.mxu0 %v169
    %695 = vmatmul.f32.gmra.mxu0 %v677
    %v696 = vpop.f32.mrf.mxu0
    %v697 = vadd.f32 0.0, %v696
    %698 = vdwg.mxu0
    %v699 = vadd.f32 %v278, %v697
    %v700 = vtanh.pop %v669
    %v701 = vmul.f32 %v700, %v163
    %v702 = vadd.f32 %v701, %v164
    %v704 = vrot.slane %v614, 6
    %v706 = vmul.f32 %v702, %v704
    %708 = vrot.lane.b32.xlu0 %v702, 64
    %v709 = vpop.permute.xlu0 %708
    %v711 = vmul.f32 %v702, %v709
    %713 = vrot.lane.b32.xlu0 %v711, 32
    %v714 = vpop.permute.xlu0 %713
    %v716 = vadd.f32 %v706, %v714
    %v717 = vtanh.pop %v716
    %719 = vrot.lane.b32.xlu0 %v717, 64
    %v720 = vpop.permute.xlu0 %719
    %v722 = vmul.f32 %v702, %v720
    %v723 = vtanh.pop %v699
    %v724 = vmul.f32 %v723, %v163
    %v725 = vadd.f32 %v724, %v164
    %v726 = vmul.f32 %v725, %v634
    %728 = vrot.lane.b32.xlu0 %v725, 64
    %v729 = vpop.permute.xlu0 %728
    %v731 = vmul.f32 %v725, %v729
    %733 = vrot.lane.b32.xlu0 %v731, 32
    %v734 = vpop.permute.xlu0 %733
    %v736 = vadd.f32 %v726, %v734
    %v737 = vtanh.pop %v736
    %739 = vrot.lane.b32.xlu0 %v737, 64
    %v740 = vpop.permute.xlu0 %739
    %v742 = vmul.f32 %v725, %v740
    %v744 = vrot.slane %v722, 2
    %745 = vrot.lane.b32.xlu0 %v744, 32
    %v746 = vpop.permute.xlu0 %745
    %v747 = vsel %vm178, %v746, 0
    %749 = vmatpush.msra.mxu0 0.0
    %750 = vmatpush.msra.mxu0 0.0
    %751 = vmatpush.msra.mxu0 0.0
    %752 = vmatpush.msra.mxu0 0.0
    %753 = vmatpush.msra.mxu0 0.0
    %754 = vmatpush.msra.mxu0 0.0
    %755 = vmatpush.msra.mxu0 0.0
    %756 = vmatpush.msra.mxu0 0.0
    %757 = vmatpush.msra.mxu0 0.0
    %758 = vmatpush.msra.mxu0 0.0
    %759 = vmatpush.msra.mxu0 0.0
    %760 = vmatpush.msra.mxu0 0.0
    %761 = vmatpush.msra.mxu0 %v168
    %762 = vmatpush.msra.mxu0 %v167
    %763 = vmatpush.msra.mxu0 %v166
    %764 = vmatpush.msra.mxu0 %v165
    %765 = vmatmul.f32.gmra.mxu0 %v747
    %v766 = vpop.f32.mrf.mxu0
    %v767 = vadd.f32 0.0, %v766
    %768 = vdwg.mxu0
    %v770 = vrot.slane %v767, 4
    %v772 = vadd.f32 %v158, %v770
    %773 = vrot.lane.b32.xlu0 %v722, 32
    %v774 = vpop.permute.xlu0 %773
    %v777 = vrot.slane %v742, 6
    %778 = vrot.lane.b32.xlu0 %v777, 64
    %v779 = vpop.permute.xlu0 %778
    %v781 = vsel %vm178, %v774, %v779
    %v783 = vrot.slane %v781, 2
    %v784 = vsel %vm254, %v783, 0
    %786 = vmatpush.msra.mxu0 0.0
    %787 = vmatpush.msra.mxu0 0.0
    %788 = vmatpush.msra.mxu0 0.0
    %789 = vmatpush.msra.mxu0 0.0
    %790 = vmatpush.msra.mxu0 0.0
    %791 = vmatpush.msra.mxu0 0.0
    %792 = vmatpush.msra.mxu0 0.0
    %793 = vmatpush.msra.mxu0 0.0
    %794 = vmatpush.msra.mxu0 %v176
    %795 = vmatpush.msra.mxu0 %v175
    %796 = vmatpush.msra.mxu0 %v174
    %797 = vmatpush.msra.mxu0 %v173
    %798 = vmatpush.msra.mxu0 %v172
    %799 = vmatpush.msra.mxu0 %v171
    %800 = vmatpush.msra.mxu0 %v170
    %801 = vmatpush.msra.mxu0 %v169
    %802 = vmatmul.f32.gmra.mxu0 %v784
    %v803 = vpop.f32.mrf.mxu0
    %v804 = vadd.f32 0.0, %v803
    %805 = vdwg.mxu0
    %v806 = vadd.f32 %v278, %v804
    %v807 = vtanh.pop %v772
    %v808 = vmul.f32 %v807, %v163
    %v809 = vadd.f32 %v808, %v164
    %v811 = vrot.slane %v716, 6
    %v813 = vmul.f32 %v809, %v811
    %815 = vrot.lane.b32.xlu0 %v809, 64
    %v816 = vpop.permute.xlu0 %815
    %v818 = vmul.f32 %v809, %v816
    %820 = vrot.lane.b32.xlu0 %v818, 32
    %v821 = vpop.permute.xlu0 %820
    %v823 = vadd.f32 %v813, %v821
    %v824 = vtanh.pop %v823
    %826 = vrot.lane.b32.xlu0 %v824, 64
    %v827 = vpop.permute.xlu0 %826
    %v829 = vmul.f32 %v809, %v827
    %v830 = vtanh.pop %v806
    %v831 = vmul.f32 %v830, %v163
    %v832 = vadd.f32 %v831, %v164
    %v833 = vmul.f32 %v832, %v736
    %835 = vrot.lane.b32.xlu0 %v832, 64
    %v836 = vpop.permute.xlu0 %835
    %v838 = vmul.f32 %v832, %v836
    %840 = vrot.lane.b32.xlu0 %v838, 32
    %v841 = vpop.permute.xlu0 %840
    %v843 = vadd.f32 %v833, %v841
    %v844 = vtanh.pop %v843
    %846 = vrot.lane.b32.xlu0 %v844, 64
    %v847 = vpop.permute.xlu0 %846
    %v849 = vmul.f32 %v832, %v847
    %v851 = vrot.slane %v829, 4
    %852 = vrot.lane.b32.xlu0 %v851, 32
    %v853 = vpop.permute.xlu0 %852
    %v854 = vsel %vm178, %v853, 0
    %856 = vmatpush.msra.mxu0 0.0
    %857 = vmatpush.msra.mxu0 0.0
    %858 = vmatpush.msra.mxu0 0.0
    %859 = vmatpush.msra.mxu0 0.0
    %860 = vmatpush.msra.mxu0 0.0
    %861 = vmatpush.msra.mxu0 0.0
    %862 = vmatpush.msra.mxu0 0.0
    %863 = vmatpush.msra.mxu0 0.0
    %864 = vmatpush.msra.mxu0 0.0
    %865 = vmatpush.msra.mxu0 0.0
    %866 = vmatpush.msra.mxu0 0.0
    %867 = vmatpush.msra.mxu0 0.0
    %868 = vmatpush.msra.mxu0 %v168
    %869 = vmatpush.msra.mxu0 %v167
    %870 = vmatpush.msra.mxu0 %v166
    %871 = vmatpush.msra.mxu0 %v165
    %872 = vmatmul.f32.gmra.mxu0 %v854
    %v873 = vpop.f32.mrf.mxu0
    %v874 = vadd.f32 0.0, %v873
    %875 = vdwg.mxu0
    %v877 = vrot.slane %v874, 2
    %v879 = vadd.f32 %v158, %v877
    %880 = vrot.lane.b32.xlu0 %v829, 32
    %v881 = vpop.permute.xlu0 %880
    %v884 = vrot.slane %v849, 4
    %885 = vrot.lane.b32.xlu0 %v884, 64
    %v886 = vpop.permute.xlu0 %885
    %v888 = vsel %vm178, %v881, %v886
    %v890 = vrot.slane %v888, 4
    %v891 = vsel %vm254, %v890, 0
    %893 = vmatpush.msra.mxu0 0.0
    %894 = vmatpush.msra.mxu0 0.0
    %895 = vmatpush.msra.mxu0 0.0
    %896 = vmatpush.msra.mxu0 0.0
    %897 = vmatpush.msra.mxu0 0.0
    %898 = vmatpush.msra.mxu0 0.0
    %899 = vmatpush.msra.mxu0 0.0
    %900 = vmatpush.msra.mxu0 0.0
    %901 = vmatpush.msra.mxu0 %v176
    %902 = vmatpush.msra.mxu0 %v175
    %903 = vmatpush.msra.mxu0 %v174
    %904 = vmatpush.msra.mxu0 %v173
    %905 = vmatpush.msra.mxu0 %v172
    %906 = vmatpush.msra.mxu0 %v171
    %907 = vmatpush.msra.mxu0 %v170
    %908 = vmatpush.msra.mxu0 %v169
    %909 = vmatmul.f32.gmra.mxu0 %v891
    %v910 = vpop.f32.mrf.mxu0
    %v911 = vadd.f32 0.0, %v910
    %912 = vdwg.mxu0
    %v913 = vadd.f32 %v278, %v911
    %v914 = vtanh.pop %v879
    %v915 = vmul.f32 %v914, %v163
    %v916 = vadd.f32 %v915, %v164
    %v918 = vrot.slane %v823, 6
    %v920 = vmul.f32 %v916, %v918
    %922 = vrot.lane.b32.xlu0 %v916, 64
    %v923 = vpop.permute.xlu0 %922
    %v925 = vmul.f32 %v916, %v923
    %927 = vrot.lane.b32.xlu0 %v925, 32
    %v928 = vpop.permute.xlu0 %927
    %v930 = vadd.f32 %v920, %v928
    %v931 = vtanh.pop %v930
    %933 = vrot.lane.b32.xlu0 %v931, 64
    %v934 = vpop.permute.xlu0 %933
    %v936 = vmul.f32 %v916, %v934
    %v937 = vtanh.pop %v913
    %v938 = vmul.f32 %v937, %v163
    %v939 = vadd.f32 %v938, %v164
    %v940 = vmul.f32 %v939, %v843
    %942 = vrot.lane.b32.xlu0 %v939, 64
    %v943 = vpop.permute.xlu0 %942
    %v945 = vmul.f32 %v939, %v943
    %947 = vrot.lane.b32.xlu0 %v945, 32
    %v948 = vpop.permute.xlu0 %947
    %v950 = vadd.f32 %v940, %v948
    %v951 = vtanh.pop %v950
    %953 = vrot.lane.b32.xlu0 %v951, 64
    %v954 = vpop.permute.xlu0 %953
    %v956 = vmul.f32 %v939, %v954
    %958 = vrot.lane.b32.xlu0 %v936, 32
    %v959 = vpop.permute.xlu0 %958
    %v962 = vrot.slane %v956, 2
    %963 = vrot.lane.b32.xlu0 %v962, 64
    %v964 = vpop.permute.xlu0 %963
    %v966 = vsel %vm178, %v959, %v964
    %v968 = vrot.slane %v966, 6
    %v969 = vsel %vm254, %v968, 0
    %971 = vmatpush.msra.mxu0 0.0
    %972 = vmatpush.msra.mxu0 0.0
    %973 = vmatpush.msra.mxu0 0.0
    %974 = vmatpush.msra.mxu0 0.0
    %975 = vmatpush.msra.mxu0 0.0
    %976 = vmatpush.msra.mxu0 0.0
    %977 = vmatpush.msra.mxu0 0.0
    %978 = vmatpush.msra.mxu0 0.0
    %979 = vmatpush.msra.mxu0 %v176
    %980 = vmatpush.msra.mxu0 %v175
    %981 = vmatpush.msra.mxu0 %v174
    %982 = vmatpush.msra.mxu0 %v173
    %983 = vmatpush.msra.mxu0 %v172
    %984 = vmatpush.msra.mxu0 %v171
    %985 = vmatpush.msra.mxu0 %v170
    %986 = vmatpush.msra.mxu0 %v169
    %987 = vmatmul.f32.gmra.mxu0 %v969
    %v988 = vpop.f32.mrf.mxu0
    %v989 = vadd.f32 0.0, %v988
    %990 = vdwg.mxu0
    %v991 = vadd.f32 %v278, %v989
    %v992 = vtanh.pop %v991
    %v993 = vmul.f32 %v992, %v163
    %v994 = vadd.f32 %v993, %v164
    %v995 = vmul.f32 %v994, %v950
    %997 = vrot.lane.b32.xlu0 %v994, 64
    %v998 = vpop.permute.xlu0 %997
    %v1000 = vmul.f32 %v994, %v998
    %1002 = vrot.lane.b32.xlu0 %v1000, 32
    %v1003 = vpop.permute.xlu0 %1002
    %v1005 = vadd.f32 %v995, %v1003
    %v1006 = vtanh.pop %v1005
    %1008 = vrot.lane.b32.xlu0 %v1006, 64
    %v1009 = vpop.permute.xlu0 %1008
    %v1011 = vmul.f32 %v994, %v1009
    %v1012 = vld [vmem:[#allocation5 + $0x110] sm:$0xff]
    %v1013 = vld [vmem:[#allocation5 + $0x118] sm:$0xff]
    %v1014 = vld [vmem:[#allocation5 + $0x120] sm:$0xff]
    %v1015 = vld [vmem:[#allocation5 + $0x128] sm:$0xff]
    %v1016 = vld [vmem:[#allocation5 + $0x130] sm:$0x1]
    %v1017 = vperm.slane %v1016, 0
    %1019 = vrot.lane.b32.xlu0 %v1011, 32
    %v1020 = vpop.permute.xlu0 %1019
    %v1021 = vsel %vm178, %v1020, 0
    %1023 = vmatpush.msra.mxu0 0.0
    %1024 = vmatpush.msra.mxu0 0.0
    %1025 = vmatpush.msra.mxu0 0.0
    %1026 = vmatpush.msra.mxu0 0.0
    %1027 = vmatpush.msra.mxu0 0.0
    %1028 = vmatpush.msra.mxu0 0.0
    %1029 = vmatpush.msra.mxu0 0.0
    %1030 = vmatpush.msra.mxu0 0.0
    %1031 = vmatpush.msra.mxu0 0.0
    %1032 = vmatpush.msra.mxu0 0.0
    %1033 = vmatpush.msra.mxu0 0.0
    %1034 = vmatpush.msra.mxu0 0.0
    %1035 = vmatpush.msra.mxu0 %v1015
    %1036 = vmatpush.msra.mxu0 %v1014
    %1037 = vmatpush.msra.mxu0 %v1013
    %1038 = vmatpush.msra.mxu0 %v1012
    %1039 = vmatmul.f32.gmra.mxu0 %v1021
    %v1040 = vpop.f32.mrf.mxu0
    %v1041 = vadd.f32 %v1017, %v1040
    %1042 = vdwg.mxu0
    %v1043 = vmax.f32 %v1041, 0.0
    %v1044 = vld [vmem:[#allocation5 + $0x138] sm:$0xff]
    %v1045 = vld [vmem:[#allocation5 + $0x140] sm:$0xff]
    %v1046 = vld [vmem:[#allocation5 + $0x148] sm:$0xff]
    %v1047 = vld [vmem:[#allocation5 + $0x150] sm:$0xff]
    %v1048 = vld [vmem:[#allocation5 + $0x158] sm:$0xff]
    %v1049 = vld [vmem:[#allocation5 + $0x160] sm:$0xff]
    %v1050 = vld [vmem:[#allocation5 + $0x168] sm:$0xff]
    %v1051 = vld [vmem:[#allocation5 + $0x170] sm:$0xff]
    %v1052 = vld [vmem:[#allocation5 + $0x178] sm:$0xff]
    %v1053 = vld [vmem:[#allocation5 + $0x180] sm:$0xff]
    %v1054 = vld [vmem:[#allocation5 + $0x188] sm:$0xff]
    %v1055 = vld [vmem:[#allocation5 + $0x190] sm:$0xff]
    %v1056 = vld [vmem:[#allocation5 + $0x198] sm:$0xff]
    %v1057 = vld [vmem:[#allocation5 + $0x1a0] sm:$0xff]
    %v1058 = vld [vmem:[#allocation5 + $0x1a8] sm:$0xff]
    %v1059 = vld [vmem:[#allocation5 + $0x1b0] sm:$0xff]
    %v1060 = vld [vmem:[#allocation5 + $0x1b8] sm:$0x1]
    %v1061 = vperm.slane %v1060, 0
    %1062 = vmatpush.msra.mxu0 %v1059
    %1063 = vmatpush.msra.mxu0 %v1058
    %1064 = vmatpush.msra.mxu0 %v1057
    %1065 = vmatpush.msra.mxu0 %v1056
    %1066 = vmatpush.msra.mxu0 %v1055
    %1067 = vmatpush.msra.mxu0 %v1054
    %1068 = vmatpush.msra.mxu0 %v1053
    %1069 = vmatpush.msra.mxu0 %v1052
    %1070 = vmatpush.msra.mxu0 %v1051
    %1071 = vmatpush.msra.mxu0 %v1050
    %1072 = vmatpush.msra.mxu0 %v1049
    %1073 = vmatpush.msra.mxu0 %v1048
    %1074 = vmatpush.msra.mxu0 %v1047
    %1075 = vmatpush.msra.mxu0 %v1046
    %1076 = vmatpush.msra.mxu0 %v1045
    %1077 = vmatpush.msra.mxu0 %v1044
    %1078 = vmatmul.f32.gmra.mxu0 %v1043
    %v1079 = vpop.f32.mrf.mxu0
    %v1080 = vadd.f32 %v1061, %v1079
    %1081 = vdwg.mxu0
    %vm1082 = vcmask 58368
    %1083 = vst.msk [vmem:[#allocation7] sm:$0x3] %vm1082, %v1080
    // Predicated region
    $region18: #{tpu_custom_call.1} parent=1 // pred_check
      _
    $region19: #{tpu_custom_call.1} parent=1 // pred_check_branch
      %1085 = sbr.rel (0) target = $region21
    $region20: #{tpu_custom_call.1} parent=1 // pred_region
      %1087 = vsyncadd [#allocation4], 0
      %s1089 = sshll.u32 [#allocation7], 4
      %s1090 = int_to_ptr.vmem [resolvable:$true] %s1089
      %s1091 = sshll.u32 %s2, 4
      %s1092 = int_to_ptr.hbm [resolvable:$true] %s1091
      %1094 = dma.vmem_to_hbm [thread:$0]  %s1090, 32, %s1092, [#allocation4]
    $region21: #{tpu_custom_call.1} parent=1 // pred_fallthru
      _
    // Predicated region
    $region22: #{tpu_custom_call.1} parent=1 // pred_check
      _
    $region23: #{tpu_custom_call.1} parent=1 // pred_check_branch
      %1096 = sbr.rel (0) target = $region25
    $region24: #{tpu_custom_call.1} parent=1 // pred_region
      %1098 = dma.done [#allocation4], 32
    $region25: #{tpu_custom_call.1} parent=1 // pred_fallthru
      _
    %1099 = vsyncpa [#allocation3], 1
    %1100 = vsyncpa [#allocation6], 1
    %1101 = vsyncpa [#allocation4], 1

</llo_original>
